<compile_context>
chip_gen: v7x
topology: tpu7x:2x2x1
jax: 0.10.0
libtpu: 0.0.40
codegen_flags: <defaults>
</compile_context>

<pallas_src>
import functools

import numpy as np
import jax
import jax.numpy as jnp
from jax import lax
from jax.experimental import pallas as pl
from jax.experimental.pallas import tpu as pltpu

# The 8 corner offsets in the same order as the PyTorch idx_list.
_CORNERS = ((0, 0, 0), (0, 0, 1), (0, 1, 0), (0, 1, 1),
            (1, 0, 0), (1, 0, 1), (1, 1, 0), (1, 1, 1))


def _ingp_kernel(xt_ref, table_t_ref, out_ref, acc_ref, *,
                 resolution, table_size, bijective, pow2, pi1, pi2, pi3):
    """Grid = (batch tiles [parallel], table tiles [arbitrary, innermost]).

    xt_ref:      (3, TB)   scaled-to-[0,1] coords, batch on the lane axis
    table_t_ref: (F, tk)   one tile of the transposed feature table
    out_ref:     (F, TB)   features, batch on the lane axis (written on last k step)
    acc_ref:     (F, TB)   f32 accumulator scratch, persistent across the k axis
    """
    k = pl.program_id(1)
    tk = table_t_ref.shape[1]
    tb = xt_ref.shape[1]

    @pl.when(k == 0)
    def _init():
        acc_ref[...] = jnp.zeros_like(acc_ref)

    # ---- per-point coordinate math, hoisted out of the 8-corner loop -------------
    xs = xt_ref[...].astype(jnp.float32) * jnp.float32(resolution)    # (3, TB)
    fl = jnp.floor(xs)
    frac = xs - fl                                                    # in [0, 1)
    # Trilinear weight factor per axis: corner offset 0 -> (1 - frac), 1 -> frac.
    wlo = 1.0 - frac                                                  # (3, TB)
    whi = frac
    fi = fl.astype(jnp.int32)                                         # (3, TB)

    r1 = resolution + 1

    def axis_terms(d, prime, scale):
        lo = fi[d:d + 1, :]
        hi = lo + 1
        if bijective:
            lo = jnp.clip(lo, 0, resolution) * scale
            hi = jnp.clip(hi, 0, resolution) * scale
        else:
            lo = lo * prime
            hi = hi * prime
        return lo, hi                                                 # (1, TB) each

    t0 = axis_terms(0, pi1, 1)
    t1 = axis_terms(1, pi2, r1)
    t2 = axis_terms(2, pi3, r1 * r1)
    wx = (wlo[0:1, :], whi[0:1, :])
    wy = (wlo[1:2, :], whi[1:2, :])
    wz = (wlo[2:3, :], whi[2:3, :])

    # ---- weighted indicator for THIS table tile only ------------------------------
    # Local row ids for the tile; regenerated per T-tile (cheap, (tk, TB) only).
    rows = lax.broadcasted_iota(jnp.int32, (tk, tb), 0)
    row0 = k * tk                                                     # tile's first global row

    w_acc = jnp.zeros((tk, tb), jnp.float32)
    for (di, dj, dk_) in _CORNERS:                                    # static unroll
        w = wx[di] * wy[dj] * wz[dk_]                                 # (1, TB), 2 vmul
        if bijective:
            idx = t0[di] + t1[dj] + t2[dk_]                           # 2 vadd
        else:
            y = t0[di] ^ t1[dj] ^ t2[dk_]                             # 2 vxor
            if pow2:
                idx = y & (table_size - 1)                            # == floor-mod for pow2
            else:
                idx = y % table_size                                  # floor-mod (th.remainder)
        # ADD (not overwrite) so two corners hashing to the same row sum their weights.
        # Rows outside this tile simply never match (idx - row0 falls outside [0, tk)).
        w_acc = w_acc + jnp.where((idx - row0) == rows, w, jnp.float32(0.0))

    # One MXU push per (batch tile, table tile): (F, tk) @ (tk, TB) -> (F, TB).
    acc_ref[...] += jnp.dot(table_t_ref[...].astype(jnp.float32), w_acc,
                            preferred_element_type=jnp.float32)

    @pl.when(k == pl.num_programs(1) - 1)
    def _finalize():
        out_ref[...] = acc_ref[...].astype(out_ref.dtype)


def ingp_table_forward(x, table, *, resolution, table_size, pi1, pi2, pi3,
                       block_b=256, block_t=512):
    """Pallas wrapper reproducing INGPTable.forward(x).

    x:     (B, 3) float32 coordinates in [0, 1]
    table: (T, F) float32 feature table
    returns (B, F) float32
    """
    b, d = x.shape
    assert d == 3, "INGPTable expects 3-D input coordinates"
    assert block_b % 128 == 0, "block_b must be a multiple of the 128-lane width"
    assert block_t % 128 == 0, "block_t must be a multiple of the 128-lane width"
    t, f = table.shape
    bijective = table_size >= (resolution + 1) ** 3
    pow2 = (not bijective) and (table_size & (table_size - 1) == 0)

    # --- batch padding: move batch onto the lane axis, pad to the tile size --------
    b_pad = ((b + block_b - 1) // block_b) * block_b
    if b_pad != b:
        x = jnp.pad(x, ((0, b_pad - b), (0, 0)))          # zero coords -> finite, harmless
    x_t = jnp.transpose(x)                                 # (3, b_pad)

    # --- table tiling along T: single tile if small, else 512-row tiles ------------
    if t <= block_t:
        tk, t_pad = t, t
    else:
        tk = block_t
        t_pad = ((t + tk - 1) // tk) * tk
    table_p = table if t_pad == t else jnp.pad(table, ((0, t_pad - t), (0, 0)))
    table_t = jnp.transpose(table_p)                       # (f, t_pad)

    n_b = b_pad // block_b
    n_t = t_pad // tk

    kernel = functools.partial(
        _ingp_kernel,
        resolution=resolution, table_size=table_size, bijective=bijective,
        pow2=pow2, pi1=pi1, pi2=pi2, pi3=pi3)

    # VMEM estimate: double-buffered x/out/table tiles, the f32 accumulator scratch,
    # and ~4x the (tk, block_b) indicator block (w_acc + iota + compare/select temps),
    # with 2x headroom.  Capped at 48 MiB -- safe on v7x (64 MiB/TC) and far below the
    # 128 MiB of v5e/v6e.
    est = 4 * (2 * 3 * block_b          # x tile (double buffered)
               + 2 * f * block_b        # out tile
               + 2 * f * tk             # table tile
               + f * block_b            # accumulator scratch
               + 4 * tk * block_b)      # indicator + iota + temporaries
    vmem_limit = int(min(max(2 * est + (2 << 20), 32 << 20), 48 << 20))

    out_t = pl.pallas_call(
        kernel,
        out_shape=jax.ShapeDtypeStruct((f, b_pad), x.dtype),
        grid_spec=pltpu.PrefetchScalarGridSpec(
            num_scalar_prefetch=0,
            grid=(n_b, n_t),                                   # reduction axis (T) last
            in_specs=[
                pl.BlockSpec((3, block_b), lambda i, k: (0, i)),   # coords (lane-dense)
                pl.BlockSpec((f, tk), lambda i, k: (0, k)),        # one table tile
            ],
            out_specs=pl.BlockSpec((f, block_b), lambda i, k: (0, i)),
            scratch_shapes=[pltpu.VMEM((f, block_b), jnp.float32)],
        ),
        compiler_params=pltpu.CompilerParams(
            dimension_semantics=("parallel", "arbitrary"),
            vmem_limit_bytes=vmem_limit),
    )(x_t, table_t)

    return jnp.transpose(out_t)[:b]                         # (B, F)


def ingp_table_ref(x, table, *, resolution, table_size, pi1, pi2, pi3):
    """Pure-JAX reference mirroring the PyTorch forward (int32 hash)."""
    bijective = table_size >= (resolution + 1) ** 3
    xs = x * resolution
    xf = jnp.floor(xs)
    corners = jnp.stack(
        [xf + jnp.asarray(c, x.dtype) for c in _CORNERS], axis=1)      # (B, 8, 3)
    ci = corners.astype(jnp.int32)
    if bijective:
        ci = jnp.clip(ci, 0, resolution)
        idx = (ci[..., 0] + ci[..., 1] * (resolution + 1)
               + ci[..., 2] * (resolution + 1) ** 2)
    else:
        idx = ((ci[..., 0] * pi1) ^ (ci[..., 1] * pi2)
               ^ (ci[..., 2] * pi3)) % table_size
    feats = table[idx]                                                  # (B, 8, F)
    w = jnp.prod(1.0 - jnp.abs(xs[:, None, :] - corners), axis=-1)      # (B, 8)
    return jnp.sum(feats * w[..., None], axis=1)


if __name__ == "__main__":
    key = jax.random.PRNGKey(0)
    kx, kt1, kt2, kt3, kt4, kt5 = jax.random.split(key, 6)

    B, F = 200, 4                         # B not a multiple of block_b -> exercises padding
    x = jax.random.uniform(kx, (B, 3), jnp.float32)   # coords in [0, 1)

    def make_table(k, rows):
        return (jax.random.uniform(k, (rows, F), jnp.float32) * 2.0 - 1.0) * 1e-4

    def run_and_check(table, table_size, resolution):
        out = ingp_table_forward(
            x, table, resolution=resolution, table_size=table_size,
            pi1=1, pi2=19, pi3=389)
        out = jax.block_until_ready(out)
        ref = ingp_table_ref(
            x, table, resolution=resolution, table_size=table_size,
            pi1=1, pi2=19, pi3=389)
        np.testing.assert_allclose(np.asarray(out), np.asarray(ref),
                                   rtol=1e-5, atol=1e-8)

    # --- Config 1: bijective (dense) table: table_size >= (res+1)^3, single T tile ---
    RES = 4
    run_and_check(make_table(kt1, (RES + 1) ** 3), (RES + 1) ** 3, RES)

    # --- Config 2: hashed table, power-of-two size, single T tile (AND path) ---------
    run_and_check(make_table(kt2, 64), 64, RES)

    # --- Config 3: hashed table, non-power-of-two size, single T tile (mod path) -----
    run_and_check(make_table(kt3, 60), 60, RES)

    # --- Config 4: hashed pow2 table large enough to exercise the T-tiled grid axis --
    RES_BIG = 15                                   # (16)^3 = 4096 > 2048 -> hashed
    run_and_check(make_table(kt4, 2048), 2048, RES_BIG)

    # --- Config 5: hashed non-pow2 table with a padded T tail (1500 -> 1536, 3 tiles) -
    run_and_check(make_table(kt5, 1500), 1500, RES_BIG)

    print("KERNEL_OK")
</pallas_src>

<mosaic_0001>
module attributes {stable_mosaic.version = 11 : i64} {
  func.func @_ingp_kernel(%arg0: i32, %arg1: i32, %arg2: memref<3x256xf32, #tpu.memory_space<vmem>>, %arg3: memref<4x125xf32, #tpu.memory_space<vmem>>, %arg4: memref<4x256xf32, #tpu.memory_space<vmem>>, %arg5: memref<4x256xf32, #tpu.memory_space<vmem>>) attributes {dimension_semantics = [#tpu.dimension_semantics<parallel>, #tpu.dimension_semantics<arbitrary>], iteration_bounds = array<i64: 1, 1>, scalar_prefetch = 0 : i64, scratch_operands = 1 : i64, tpu.core_type = #tpu.core_type<tc>, window_params = [{transform_indices = @transform_0, window_bounds = array<i64: 3, 256>}, {transform_indices = @transform_1, window_bounds = array<i64: 4, 125>}, {transform_indices = @transform_2, window_bounds = array<i64: 4, 256>}]} {
    %c0_i32 = arith.constant 0 : i32
    %0 = arith.cmpi eq, %arg1, %c0_i32 : i32
    %1 = arith.extui %0 : i1 to i32
    %c0_i32_0 = arith.constant 0 : i32
    %2 = arith.cmpi ne, %1, %c0_i32_0 : i32
    scf.if %2 {
      %cst_38 = arith.constant 0.000000e+00 : f32
      %177 = vector.broadcast %cst_38 : f32 to vector<4x256xf32>
      %c0_39 = arith.constant 0 : index
      %c0_40 = arith.constant 0 : index
      %178 = vector.load %arg5[%c0_39, %c0_40] : memref<4x256xf32, #tpu.memory_space<vmem>>, vector<4x256xf32>
      tpu.vector_store %arg5[%c0_39, %c0_40], %177 {strides = array<i32>} : memref<4x256xf32, #tpu.memory_space<vmem>>, vector<4x256xf32>,
    } else {
    }
    %c0 = arith.constant 0 : index
    %c0_1 = arith.constant 0 : index
    %3 = vector.load %arg2[%c0, %c0_1] : memref<3x256xf32, #tpu.memory_space<vmem>>, vector<3x256xf32>
    %cst = arith.constant 4.000000e+00 : f32
    %4 = vector.broadcast %cst : f32 to vector<3x256xf32>
    %5 = arith.mulf %3, %4 : vector<3x256xf32>
    %6 = math.floor %5 : vector<3x256xf32>
    %7 = arith.subf %5, %6 : vector<3x256xf32>
    %cst_2 = arith.constant 1.000000e+00 : f32
    %8 = vector.broadcast %cst_2 : f32 to vector<3x256xf32>
    %9 = arith.subf %8, %7 : vector<3x256xf32>
    %10 = arith.fptosi %6 : vector<3x256xf32> to vector<3x256xi32>
    %11 = vector.extract_strided_slice %10 {offsets = [0, 0], sizes = [1, 256], strides = [1, 1]} : vector<3x256xi32> to vector<1x256xi32>
    %c1_i32 = arith.constant 1 : i32
    %12 = vector.broadcast %c1_i32 : i32 to vector<1x256xi32>
    %13 = arith.addi %11, %12 : vector<1x256xi32>
    %c0_i32_3 = arith.constant 0 : i32
    %c4_i32 = arith.constant 4 : i32
    %14 = vector.broadcast %c0_i32_3 : i32 to vector<1x256xi32>
    %15 = arith.maxsi %14, %11 : vector<1x256xi32>
    %16 = vector.broadcast %c4_i32 : i32 to vector<1x256xi32>
    %17 = arith.minsi %16, %15 : vector<1x256xi32>
    %c1_i32_4 = arith.constant 1 : i32
    %18 = vector.broadcast %c1_i32_4 : i32 to vector<1x256xi32>
    %19 = arith.muli %17, %18 : vector<1x256xi32>
    %c0_i32_5 = arith.constant 0 : i32
    %c4_i32_6 = arith.constant 4 : i32
    %20 = vector.broadcast %c0_i32_5 : i32 to vector<1x256xi32>
    %21 = arith.maxsi %20, %13 : vector<1x256xi32>
    %22 = vector.broadcast %c4_i32_6 : i32 to vector<1x256xi32>
    %23 = arith.minsi %22, %21 : vector<1x256xi32>
    %c1_i32_7 = arith.constant 1 : i32
    %24 = vector.broadcast %c1_i32_7 : i32 to vector<1x256xi32>
    %25 = arith.muli %23, %24 : vector<1x256xi32>
    %26 = vector.extract_strided_slice %10 {offsets = [1, 0], sizes = [1, 256], strides = [1, 1]} : vector<3x256xi32> to vector<1x256xi32>
    %c1_i32_8 = arith.constant 1 : i32
    %27 = vector.broadcast %c1_i32_8 : i32 to vector<1x256xi32>
    %28 = arith.addi %26, %27 : vector<1x256xi32>
    %c0_i32_9 = arith.constant 0 : i32
    %c4_i32_10 = arith.constant 4 : i32
    %29 = vector.broadcast %c0_i32_9 : i32 to vector<1x256xi32>
    %30 = arith.maxsi %29, %26 : vector<1x256xi32>
    %31 = vector.broadcast %c4_i32_10 : i32 to vector<1x256xi32>
    %32 = arith.minsi %31, %30 : vector<1x256xi32>
    %c5_i32 = arith.constant 5 : i32
    %33 = vector.broadcast %c5_i32 : i32 to vector<1x256xi32>
    %34 = arith.muli %32, %33 : vector<1x256xi32>
    %c0_i32_11 = arith.constant 0 : i32
    %c4_i32_12 = arith.constant 4 : i32
    %35 = vector.broadcast %c0_i32_11 : i32 to vector<1x256xi32>
    %36 = arith.maxsi %35, %28 : vector<1x256xi32>
    %37 = vector.broadcast %c4_i32_12 : i32 to vector<1x256xi32>
    %38 = arith.minsi %37, %36 : vector<1x256xi32>
    %c5_i32_13 = arith.constant 5 : i32
    %39 = vector.broadcast %c5_i32_13 : i32 to vector<1x256xi32>
    %40 = arith.muli %38, %39 : vector<1x256xi32>
    %41 = vector.extract_strided_slice %10 {offsets = [2, 0], sizes = [1, 256], strides = [1, 1]} : vector<3x256xi32> to vector<1x256xi32>
    %c1_i32_14 = arith.constant 1 : i32
    %42 = vector.broadcast %c1_i32_14 : i32 to vector<1x256xi32>
    %43 = arith.addi %41, %42 : vector<1x256xi32>
    %c0_i32_15 = arith.constant 0 : i32
    %c4_i32_16 = arith.constant 4 : i32
    %44 = vector.broadcast %c0_i32_15 : i32 to vector<1x256xi32>
    %45 = arith.maxsi %44, %41 : vector<1x256xi32>
    %46 = vector.broadcast %c4_i32_16 : i32 to vector<1x256xi32>
    %47 = arith.minsi %46, %45 : vector<1x256xi32>
    %c25_i32 = arith.constant 25 : i32
    %48 = vector.broadcast %c25_i32 : i32 to vector<1x256xi32>
    %49 = arith.muli %47, %48 : vector<1x256xi32>
    %c0_i32_17 = arith.constant 0 : i32
    %c4_i32_18 = arith.constant 4 : i32
    %50 = vector.broadcast %c0_i32_17 : i32 to vector<1x256xi32>
    %51 = arith.maxsi %50, %43 : vector<1x256xi32>
    %52 = vector.broadcast %c4_i32_18 : i32 to vector<1x256xi32>
    %53 = arith.minsi %52, %51 : vector<1x256xi32>
    %c25_i32_19 = arith.constant 25 : i32
    %54 = vector.broadcast %c25_i32_19 : i32 to vector<1x256xi32>
    %55 = arith.muli %53, %54 : vector<1x256xi32>
    %56 = vector.extract_strided_slice %9 {offsets = [0, 0], sizes = [1, 256], strides = [1, 1]} : vector<3x256xf32> to vector<1x256xf32>
    %57 = vector.extract_strided_slice %7 {offsets = [0, 0], sizes = [1, 256], strides = [1, 1]} : vector<3x256xf32> to vector<1x256xf32>
    %58 = vector.extract_strided_slice %9 {offsets = [1, 0], sizes = [1, 256], strides = [1, 1]} : vector<3x256xf32> to vector<1x256xf32>
    %59 = vector.extract_strided_slice %7 {offsets = [1, 0], sizes = [1, 256], strides = [1, 1]} : vector<3x256xf32> to vector<1x256xf32>
    %60 = vector.extract_strided_slice %9 {offsets = [2, 0], sizes = [1, 256], strides = [1, 1]} : vector<3x256xf32> to vector<1x256xf32>
    %61 = vector.extract_strided_slice %7 {offsets = [2, 0], sizes = [1, 256], strides = [1, 1]} : vector<3x256xf32> to vector<1x256xf32>
    %62 = tpu.iota {dimensions = array<i32: 0>} : vector<125x256xi32>
    %c125_i32 = arith.constant 125 : i32
    %63 = arith.muli %arg1, %c125_i32 : i32
    %cst_20 = arith.constant 0.000000e+00 : f32
    %64 = vector.broadcast %cst_20 : f32 to vector<125x256xf32>
    %65 = arith.mulf %56, %58 : vector<1x256xf32>
    %66 = arith.mulf %65, %60 : vector<1x256xf32>
    %67 = arith.addi %19, %34 : vector<1x256xi32>
    %68 = arith.addi %67, %49 : vector<1x256xi32>
    %69 = vector.broadcast %63 : i32 to vector<1x256xi32>
    %70 = arith.subi %68, %69 : vector<1x256xi32>
    %71 = vector.broadcast %70 : vector<1x256xi32> to vector<125x256xi32>
    %72 = arith.cmpi eq, %71, %62 : vector<125x256xi32>
    %cst_21 = arith.constant 0.000000e+00 : f32
    %73 = vector.shape_cast %66 : vector<1x256xf32> to vector<1x256xf32>
    %74 = vector.broadcast %73 : vector<1x256xf32> to vector<125x256xf32>
    %75 = vector.broadcast %cst_21 : f32 to vector<125x256xf32>
    %76 = arith.select %72, %74, %75 : vector<125x256xi1>, vector<125x256xf32>
    %77 = arith.addf %64, %76 : vector<125x256xf32>
    %78 = arith.mulf %56, %58 : vector<1x256xf32>
    %79 = arith.mulf %78, %61 : vector<1x256xf32>
    %80 = arith.addi %19, %34 : vector<1x256xi32>
    %81 = arith.addi %80, %55 : vector<1x256xi32>
    %82 = vector.broadcast %63 : i32 to vector<1x256xi32>
    %83 = arith.subi %81, %82 : vector<1x256xi32>
    %84 = vector.broadcast %83 : vector<1x256xi32> to vector<125x256xi32>
    %85 = arith.cmpi eq, %84, %62 : vector<125x256xi32>
    %cst_22 = arith.constant 0.000000e+00 : f32
    %86 = vector.shape_cast %79 : vector<1x256xf32> to vector<1x256xf32>
    %87 = vector.broadcast %86 : vector<1x256xf32> to vector<125x256xf32>
    %88 = vector.broadcast %cst_22 : f32 to vector<125x256xf32>
    %89 = arith.select %85, %87, %88 : vector<125x256xi1>, vector<125x256xf32>
    %90 = arith.addf %77, %89 : vector<125x256xf32>
    %91 = arith.mulf %56, %59 : vector<1x256xf32>
    %92 = arith.mulf %91, %60 : vector<1x256xf32>
    %93 = arith.addi %19, %40 : vector<1x256xi32>
    %94 = arith.addi %93, %49 : vector<1x256xi32>
    %95 = vector.broadcast %63 : i32 to vector<1x256xi32>
    %96 = arith.subi %94, %95 : vector<1x256xi32>
    %97 = vector.broadcast %96 : vector<1x256xi32> to vector<125x256xi32>
    %98 = arith.cmpi eq, %97, %62 : vector<125x256xi32>
    %cst_23 = arith.constant 0.000000e+00 : f32
    %99 = vector.shape_cast %92 : vector<1x256xf32> to vector<1x256xf32>
    %100 = vector.broadcast %99 : vector<1x256xf32> to vector<125x256xf32>
    %101 = vector.broadcast %cst_23 : f32 to vector<125x256xf32>
    %102 = arith.select %98, %100, %101 : vector<125x256xi1>, vector<125x256xf32>
    %103 = arith.addf %90, %102 : vector<125x256xf32>
    %104 = arith.mulf %56, %59 : vector<1x256xf32>
    %105 = arith.mulf %104, %61 : vector<1x256xf32>
    %106 = arith.addi %19, %40 : vector<1x256xi32>
    %107 = arith.addi %106, %55 : vector<1x256xi32>
    %108 = vector.broadcast %63 : i32 to vector<1x256xi32>
    %109 = arith.subi %107, %108 : vector<1x256xi32>
    %110 = vector.broadcast %109 : vector<1x256xi32> to vector<125x256xi32>
    %111 = arith.cmpi eq, %110, %62 : vector<125x256xi32>
    %cst_24 = arith.constant 0.000000e+00 : f32
    %112 = vector.shape_cast %105 : vector<1x256xf32> to vector<1x256xf32>
    %113 = vector.broadcast %112 : vector<1x256xf32> to vector<125x256xf32>
    %114 = vector.broadcast %cst_24 : f32 to vector<125x256xf32>
    %115 = arith.select %111, %113, %114 : vector<125x256xi1>, vector<125x256xf32>
    %116 = arith.addf %103, %115 : vector<125x256xf32>
    %117 = arith.mulf %57, %58 : vector<1x256xf32>
    %118 = arith.mulf %117, %60 : vector<1x256xf32>
    %119 = arith.addi %25, %34 : vector<1x256xi32>
    %120 = arith.addi %119, %49 : vector<1x256xi32>
    %121 = vector.broadcast %63 : i32 to vector<1x256xi32>
    %122 = arith.subi %120, %121 : vector<1x256xi32>
    %123 = vector.broadcast %122 : vector<1x256xi32> to vector<125x256xi32>
    %124 = arith.cmpi eq, %123, %62 : vector<125x256xi32>
    %cst_25 = arith.constant 0.000000e+00 : f32
    %125 = vector.shape_cast %118 : vector<1x256xf32> to vector<1x256xf32>
    %126 = vector.broadcast %125 : vector<1x256xf32> to vector<125x256xf32>
    %127 = vector.broadcast %cst_25 : f32 to vector<125x256xf32>
    %128 = arith.select %124, %126, %127 : vector<125x256xi1>, vector<125x256xf32>
    %129 = arith.addf %116, %128 : vector<125x256xf32>
    %130 = arith.mulf %57, %58 : vector<1x256xf32>
    %131 = arith.mulf %130, %61 : vector<1x256xf32>
    %132 = arith.addi %25, %34 : vector<1x256xi32>
    %133 = arith.addi %132, %55 : vector<1x256xi32>
    %134 = vector.broadcast %63 : i32 to vector<1x256xi32>
    %135 = arith.subi %133, %134 : vector<1x256xi32>
    %136 = vector.broadcast %135 : vector<1x256xi32> to vector<125x256xi32>
    %137 = arith.cmpi eq, %136, %62 : vector<125x256xi32>
    %cst_26 = arith.constant 0.000000e+00 : f32
    %138 = vector.shape_cast %131 : vector<1x256xf32> to vector<1x256xf32>
    %139 = vector.broadcast %138 : vector<1x256xf32> to vector<125x256xf32>
    %140 = vector.broadcast %cst_26 : f32 to vector<125x256xf32>
    %141 = arith.select %137, %139, %140 : vector<125x256xi1>, vector<125x256xf32>
    %142 = arith.addf %129, %141 : vector<125x256xf32>
    %143 = arith.mulf %57, %59 : vector<1x256xf32>
    %144 = arith.mulf %143, %60 : vector<1x256xf32>
    %145 = arith.addi %25, %40 : vector<1x256xi32>
    %146 = arith.addi %145, %49 : vector<1x256xi32>
    %147 = vector.broadcast %63 : i32 to vector<1x256xi32>
    %148 = arith.subi %146, %147 : vector<1x256xi32>
    %149 = vector.broadcast %148 : vector<1x256xi32> to vector<125x256xi32>
    %150 = arith.cmpi eq, %149, %62 : vector<125x256xi32>
    %cst_27 = arith.constant 0.000000e+00 : f32
    %151 = vector.shape_cast %144 : vector<1x256xf32> to vector<1x256xf32>
    %152 = vector.broadcast %151 : vector<1x256xf32> to vector<125x256xf32>
    %153 = vector.broadcast %cst_27 : f32 to vector<125x256xf32>
    %154 = arith.select %150, %152, %153 : vector<125x256xi1>, vector<125x256xf32>
    %155 = arith.addf %142, %154 : vector<125x256xf32>
    %156 = arith.mulf %57, %59 : vector<1x256xf32>
    %157 = arith.mulf %156, %61 : vector<1x256xf32>
    %158 = arith.addi %25, %40 : vector<1x256xi32>
    %159 = arith.addi %158, %55 : vector<1x256xi32>
    %160 = vector.broadcast %63 : i32 to vector<1x256xi32>
    %161 = arith.subi %159, %160 : vector<1x256xi32>
    %162 = vector.broadcast %161 : vector<1x256xi32> to vector<125x256xi32>
    %163 = arith.cmpi eq, %162, %62 : vector<125x256xi32>
    %cst_28 = arith.constant 0.000000e+00 : f32
    %164 = vector.shape_cast %157 : vector<1x256xf32> to vector<1x256xf32>
    %165 = vector.broadcast %164 : vector<1x256xf32> to vector<125x256xf32>
    %166 = vector.broadcast %cst_28 : f32 to vector<125x256xf32>
    %167 = arith.select %163, %165, %166 : vector<125x256xi1>, vector<125x256xf32>
    %168 = arith.addf %155, %167 : vector<125x256xf32>
    %c0_29 = arith.constant 0 : index
    %c0_30 = arith.constant 0 : index
    %169 = vector.load %arg5[%c0_29, %c0_30] : memref<4x256xf32, #tpu.memory_space<vmem>>, vector<4x256xf32>
    %c0_31 = arith.constant 0 : index
    %c0_32 = arith.constant 0 : index
    %170 = vector.load %arg3[%c0_31, %c0_32] : memref<4x125xf32, #tpu.memory_space<vmem>>, vector<4x125xf32>
    %cst_33 = arith.constant dense<0.000000e+00> : vector<4x256xf32>
    %171 = tpu.matmul %170, %168, %cst_33 {dimension_numbers = #tpu.dot_dimension_numbers<[1], [0], [0], [1], [0, 0, 1, 1], [], []>} : vector<4x125xf32>, vector<125x256xf32>, vector<4x256xf32> -> vector<4x256xf32>
    %172 = arith.addf %169, %171 : vector<4x256xf32>
    %c0_34 = arith.constant 0 : index
    %c0_35 = arith.constant 0 : index
    %173 = vector.load %arg5[%c0_34, %c0_35] : memref<4x256xf32, #tpu.memory_space<vmem>>, vector<4x256xf32>
    tpu.vector_store %arg5[%c0_34, %c0_35], %172 {strides = array<i32>} : memref<4x256xf32, #tpu.memory_space<vmem>>, vector<4x256xf32>,
    %c0_i32_36 = arith.constant 0 : i32
    %174 = arith.cmpi eq, %arg1, %c0_i32_36 : i32
    %175 = arith.extui %174 : i1 to i32
    %c0_i32_37 = arith.constant 0 : i32
    %176 = arith.cmpi ne, %175, %c0_i32_37 : i32
    scf.if %176 {
      %c0_38 = arith.constant 0 : index
      %c0_39 = arith.constant 0 : index
      %177 = vector.load %arg5[%c0_38, %c0_39] : memref<4x256xf32, #tpu.memory_space<vmem>>, vector<4x256xf32>
      %c0_40 = arith.constant 0 : index
      %c0_41 = arith.constant 0 : index
      %178 = vector.load %arg4[%c0_40, %c0_41] : memref<4x256xf32, #tpu.memory_space<vmem>>, vector<4x256xf32>
      tpu.vector_store %arg4[%c0_40, %c0_41], %177 {strides = array<i32>} : memref<4x256xf32, #tpu.memory_space<vmem>>, vector<4x256xf32>,
    } else {
    }
    return
  }
  func.func @transform_0(%arg0: i32, %arg1: i32) -> (i32, i32) {
    %c0_i32 = arith.constant 0 : i32
    %c0_i32_0 = arith.constant 0 : i32
    return %c0_i32, %arg0 : i32, i32
  }
  func.func @transform_1(%arg0: i32, %arg1: i32) -> (i32, i32) {
    %c0_i32 = arith.constant 0 : i32
    %c0_i32_0 = arith.constant 0 : i32
    return %c0_i32, %arg1 : i32, i32
  }
  func.func @transform_2(%arg0: i32, %arg1: i32) -> (i32, i32) {
    %c0_i32 = arith.constant 0 : i32
    %c0_i32_0 = arith.constant 0 : i32
    return %c0_i32, %arg0 : i32, i32
  }
}

</mosaic_0001>

<llo_original>
// kernel: tpu_custom_call.1
$region0: #{tpu_custom_call.1}
  #allocation0 [shape = 'u32[]', space=smem, size = 0x4, offset = 0x4, fixed_abs, tag = 'smem constant byte address 0x4 - core index']
  #allocation1 [shape = 'u32[144,128]{1,0:T(1,128)}', space=vmem, size = 0x12000, scoped, tag = 'internal scratch']
  #allocation2 [shape = 'f32[4,256]{1,0:T(4,128)}', space=vmem, size = 0x1000, scoped, tag = 'scratch operand']
  %s0 = inlined_call_operand.hbm [shape: f32[3,256], index: 0, kind: input, shape index: {}]
  %s1 = inlined_call_operand.hbm [shape: f32[4,125], index: 1, kind: input, shape index: {}]
  %s2 = inlined_call_operand.hbm [shape: f32[4,256], index: 2, kind: output, shape index: {}]
  %s3 = sld [smem:[#allocation0]]
  $region34: #{tpu_custom_call.1} parent=0
    _
  %s5 = ssub.s32 1, %s3
  %s6 = scalar_select 0, %s5, %s3
  $region1: #{tpu_custom_call.1} parent=0
    #allocation3 [shape = 'u8[4096]{0}', space=vmem, size = 0x1000, scoped, tag = 'input window, operand 0, single buffered']
    #allocation4 [shape = 's32[1]{0}', space=sflag, size = 0x4, scoped, tag = 'scoped memory for tpu_custom_call.1']
    #allocation5 [shape = 's32[1]{0}', space=sflag, size = 0x4, scoped, tag = 'scoped memory for tpu_custom_call.1']
    #allocation6 [shape = 'u8[2048]{0}', space=vmem, size = 0x800, scoped, tag = 'input window, operand 1, single buffered']
    #allocation7 [shape = 's32[1]{0}', space=sflag, size = 0x4, scoped, tag = 'scoped memory for tpu_custom_call.1']
    #allocation8 [shape = 'u8[4096]{0}', space=vmem, size = 0x1000, scoped, tag = 'output window, operand 0, single buffered']
    %7 = vsyncpa [#allocation4], 0
    %8 = vsyncpa [#allocation7], 0
    %9 = vsyncpa [#allocation5], 0
    // Predicated region
    $region2: #{tpu_custom_call.1} parent=1 // pred_check
      _
    $region3: #{tpu_custom_call.1} parent=1 // pred_check_branch
      %11 = sbr.rel (0) target = $region5
    $region4: #{tpu_custom_call.1} parent=1 // pred_region
      %s13 = ssub.s32 128, 128
      %14 = vsyncadd [#allocation4], %s13
      %s16 = sshll.u32 [#allocation3], 4
      %s17 = int_to_ptr.vmem [resolvable:$true] %s16
      %19 = dma.hbm_to_vmem [thread:$0]  %s0, 128, %s17, [#allocation4]
    $region5: #{tpu_custom_call.1} parent=1 // pred_fallthru
      _
    // Predicated region
    $region6: #{tpu_custom_call.1} parent=1 // pred_check
      _
    $region7: #{tpu_custom_call.1} parent=1 // pred_check_branch
      %21 = sbr.rel (0) target = $region9
    $region8: #{tpu_custom_call.1} parent=1 // pred_region
      %s23 = ssub.s32 64, 64
      %24 = vsyncadd [#allocation7], %s23
      %s26 = sshll.u32 [#allocation6], 4
      %s27 = int_to_ptr.vmem [resolvable:$true] %s26
      %29 = dma.hbm_to_vmem [thread:$0]  %s1, 64, %s27, [#allocation7]
    $region9: #{tpu_custom_call.1} parent=1 // pred_fallthru
      _
    // Predicated region
    $region10: #{tpu_custom_call.1} parent=1 // pred_check
      _
    $region11: #{tpu_custom_call.1} parent=1 // pred_check_branch
      %31 = sbr.rel (0) target = $region13
    $region12: #{tpu_custom_call.1} parent=1 // pred_region
      %32 = dma.done [#allocation4], 128
    $region13: #{tpu_custom_call.1} parent=1 // pred_fallthru
      _
    // Predicated region
    $region14: #{tpu_custom_call.1} parent=1 // pred_check
      _
    $region15: #{tpu_custom_call.1} parent=1 // pred_check_branch
      %34 = sbr.rel (0) target = $region17
    $region16: #{tpu_custom_call.1} parent=1 // pred_region
      %35 = dma.done [#allocation7], 64
    $region17: #{tpu_custom_call.1} parent=1 // pred_fallthru
      _
    %p36 = scmp.eq.s32.totalorder 0, 0
    // Predicated region
    $region18: #{tpu_custom_call.1} parent=1 // pred_check
      %p37 = pneg %p36
    $region19: #{tpu_custom_call.1} parent=1 // pred_check_branch
      %39 = sbr.rel (%p37) target = $region21
    $region20: #{tpu_custom_call.1} parent=1 // pred_region
      %40 = vst [vmem:[#allocation2] sm:$0xff] 0.0
    $region21: #{tpu_custom_call.1} parent=1 // pred_fallthru
      _
    %v41 = vld [vmem:[#allocation3] sm:$0x77]
    %v42 = vmul.f32 %v41, 4.0
    %v43 = vfloor.f32 %v42
    %v44 = vsub.f32 %v42, %v43
    %v45 = vsub.f32 1.0, %v44
    %v46 = vcvt.f32.s32.to.zero.pseudo %v43
    %v47 = vadd.s32 %v46, 1
    %vm48 = vcmp.gt.s32.totalorder %v46, 0
    %v49 = vsel %vm48, %v46, 0
    %vm50 = vcmp.lt.s32.totalorder %v49, 4
    %v51 = vsel %vm50, %v49, 4
    %vm52 = vcmp.gt.s32.totalorder %v47, 0
    %v53 = vsel %vm52, %v47, 0
    %vm54 = vcmp.lt.s32.totalorder %v53, 4
    %v55 = vsel %vm54, %v53, 4
    %v56 = vmul.u32 %v51, 5
    %v57 = vmul.u32 %v55, 5
    %v58 = vmul.u32 %v51, 25
    %v59 = vmul.u32 %v55, 25
    %v60 = vlaneseq
    %v61 = vshrl.u32 %v60, 7
    %v62 = vadd.s32 %v61, 8
    %v63 = vadd.s32 %v61, 16
    %v64 = vadd.s32 %v61, 24
    %v65 = vadd.s32 %v61, 32
    %v66 = vadd.s32 %v61, 40
    %v67 = vadd.s32 %v61, 48
    %v68 = vadd.s32 %v61, 56
    %v69 = vadd.s32 %v61, 64
    %v70 = vadd.s32 %v61, 72
    %v71 = vadd.s32 %v61, 80
    %v72 = vadd.s32 %v61, 88
    %v73 = vadd.s32 %v61, 96
    %v74 = vadd.s32 %v61, 104
    %v75 = vadd.s32 %v61, 112
    %v76 = vadd.s32 %v61, 120
    %s77 = smul.u32 0, 125
    %v79 = vrot.slane %v45, 5
    %v80 = vrot.slane %v79, 4
    %v82 = vmul.f32 %v45, %v80
    %v83 = vrot.slane %v45, 6
    %v84 = vrot.slane %v83, 4
    %v86 = vmul.f32 %v82, %v84
    %v87 = vrot.slane %v56, 5
    %v88 = vrot.slane %v87, 4
    %v89 = vadd.s32 %v51, %v88
    %v90 = vrot.slane %v58, 6
    %v91 = vrot.slane %v90, 4
    %v92 = vadd.s32 %v89, %v91
    %v93 = vstv %s77
    %v94 = vsub.s32 %v92, %v93
    %v95 = vlaneseq
    %v96 = vshrl.u32 %v95, 7
    %v97 = vsub.s32 0, %v96
    %v98 = vrot.slane %v94, %v97
    %v99 = vlaneseq
    %v100 = vshrl.u32 %v99, 7
    %v101 = vsub.s32 4, %v100
    %v102 = vrot.slane %v94, %v101
    %v103 = vlaneseq
    %v104 = vshrl.u32 %v103, 7
    %v105 = vsub.s32 0, %v104
    %v106 = vrot.slane %v98, %v105
    %v107 = vlaneseq
    %v108 = vshrl.u32 %v107, 7
    %v109 = vsub.s32 0, %v108
    %v110 = vrot.slane %v102, %v109
    %vm111 = vcmp.eq.s32.totalorder %v106, %v61
    %vm112 = vcmp.eq.s32.totalorder %v110, %v61
    %vm113 = vcmp.eq.s32.totalorder %v106, %v62
    %vm114 = vcmp.eq.s32.totalorder %v110, %v62
    %vm115 = vcmp.eq.s32.totalorder %v106, %v63
    %vm116 = vcmp.eq.s32.totalorder %v110, %v63
    %vm117 = vcmp.eq.s32.totalorder %v106, %v64
    %vm118 = vcmp.eq.s32.totalorder %v110, %v64
    %vm119 = vcmp.eq.s32.totalorder %v106, %v65
    %vm120 = vcmp.eq.s32.totalorder %v110, %v65
    %vm121 = vcmp.eq.s32.totalorder %v106, %v66
    %vm122 = vcmp.eq.s32.totalorder %v110, %v66
    %vm123 = vcmp.eq.s32.totalorder %v106, %v67
    %vm124 = vcmp.eq.s32.totalorder %v110, %v67
    %vm125 = vcmp.eq.s32.totalorder %v106, %v68
    %vm126 = vcmp.eq.s32.totalorder %v110, %v68
    %vm127 = vcmp.eq.s32.totalorder %v106, %v69
    %vm128 = vcmp.eq.s32.totalorder %v110, %v69
    %vm129 = vcmp.eq.s32.totalorder %v106, %v70
    %vm130 = vcmp.eq.s32.totalorder %v110, %v70
    %vm131 = vcmp.eq.s32.totalorder %v106, %v71
    %vm132 = vcmp.eq.s32.totalorder %v110, %v71
    %vm133 = vcmp.eq.s32.totalorder %v106, %v72
    %vm134 = vcmp.eq.s32.totalorder %v110, %v72
    %vm135 = vcmp.eq.s32.totalorder %v106, %v73
    %vm136 = vcmp.eq.s32.totalorder %v110, %v73
    %vm137 = vcmp.eq.s32.totalorder %v106, %v74
    %vm138 = vcmp.eq.s32.totalorder %v110, %v74
    %vm139 = vcmp.eq.s32.totalorder %v106, %v75
    %vm140 = vcmp.eq.s32.totalorder %v110, %v75
    %vm141 = vcmp.eq.s32.totalorder %v106, %v76
    %vm142 = vcmp.eq.s32.totalorder %v110, %v76
    %v144 = vlaneseq
    %v145 = vshrl.u32 %v144, 7
    %v146 = vsub.s32 0, %v145
    %v147 = vrot.slane %v86, %v146
    %v148 = vlaneseq
    %v149 = vshrl.u32 %v148, 7
    %v150 = vsub.s32 4, %v149
    %v151 = vrot.slane %v86, %v150
    %v154 = vlaneseq
    %v155 = vshrl.u32 %v154, 7
    %v156 = vsub.s32 0, %v155
    %v157 = vrot.slane %v147, %v156
    %v158 = vlaneseq
    %v159 = vshrl.u32 %v158, 7
    %v160 = vsub.s32 0, %v159
    %v161 = vrot.slane %v151, %v160
    %v162 = vsel %vm111, %v157, 0.0
    %v163 = vsel %vm112, %v161, 0.0
    %v164 = vsel %vm113, %v157, 0.0
    %v165 = vsel %vm114, %v161, 0.0
    %v166 = vsel %vm115, %v157, 0.0
    %v167 = vsel %vm116, %v161, 0.0
    %v168 = vsel %vm117, %v157, 0.0
    %v169 = vsel %vm118, %v161, 0.0
    %v170 = vsel %vm119, %v157, 0.0
    %v171 = vsel %vm120, %v161, 0.0
    %v172 = vsel %vm121, %v157, 0.0
    %v173 = vsel %vm122, %v161, 0.0
    %v174 = vsel %vm123, %v157, 0.0
    %v175 = vsel %vm124, %v161, 0.0
    %v176 = vsel %vm125, %v157, 0.0
    %v177 = vsel %vm126, %v161, 0.0
    %v178 = vsel %vm127, %v157, 0.0
    %v179 = vsel %vm128, %v161, 0.0
    %v180 = vsel %vm129, %v157, 0.0
    %v181 = vsel %vm130, %v161, 0.0
    %v182 = vsel %vm131, %v157, 0.0
    %v183 = vsel %vm132, %v161, 0.0
    %v184 = vsel %vm133, %v157, 0.0
    %v185 = vsel %vm134, %v161, 0.0
    %v186 = vsel %vm135, %v157, 0.0
    %v187 = vsel %vm136, %v161, 0.0
    %v188 = vsel %vm137, %v157, 0.0
    %v189 = vsel %vm138, %v161, 0.0
    %v190 = vsel %vm139, %v157, 0.0
    %v191 = vsel %vm140, %v161, 0.0
    %v192 = vsel %vm141, %v157, 0.0
    %v193 = vsel %vm142, %v161, 0.0
    %v194 = vadd.f32 %v162, 0.0
    %v195 = vadd.f32 %v163, 0.0
    %v196 = vadd.f32 %v164, 0.0
    %v197 = vadd.f32 %v165, 0.0
    %v198 = vadd.f32 %v166, 0.0
    %v199 = vadd.f32 %v167, 0.0
    %v200 = vadd.f32 %v168, 0.0
    %v201 = vadd.f32 %v169, 0.0
    %v202 = vadd.f32 %v170, 0.0
    %v203 = vadd.f32 %v171, 0.0
    %v204 = vadd.f32 %v172, 0.0
    %v205 = vadd.f32 %v173, 0.0
    %v206 = vadd.f32 %v174, 0.0
    %v207 = vadd.f32 %v175, 0.0
    %v208 = vadd.f32 %v176, 0.0
    %v209 = vadd.f32 %v177, 0.0
    %v210 = vadd.f32 %v178, 0.0
    %v211 = vadd.f32 %v179, 0.0
    %v212 = vadd.f32 %v180, 0.0
    %v213 = vadd.f32 %v181, 0.0
    %v214 = vadd.f32 %v182, 0.0
    %v215 = vadd.f32 %v183, 0.0
    %v216 = vadd.f32 %v184, 0.0
    %v217 = vadd.f32 %v185, 0.0
    %v218 = vadd.f32 %v186, 0.0
    %v219 = vadd.f32 %v187, 0.0
    %v220 = vadd.f32 %v188, 0.0
    %v221 = vadd.f32 %v189, 0.0
    %v222 = vadd.f32 %v190, 0.0
    %v223 = vadd.f32 %v191, 0.0
    %v224 = vadd.f32 %v192, 0.0
    %v225 = vadd.f32 %v193, 0.0
    %v227 = vrot.slane %v44, 6
    %v228 = vrot.slane %v227, 4
    %v230 = vmul.f32 %v82, %v228
    %v231 = vrot.slane %v59, 6
    %v232 = vrot.slane %v231, 4
    %v233 = vadd.s32 %v89, %v232
    %v234 = vsub.s32 %v233, %v93
    %v235 = vlaneseq
    %v236 = vshrl.u32 %v235, 7
    %v237 = vsub.s32 0, %v236
    %v238 = vrot.slane %v234, %v237
    %v239 = vlaneseq
    %v240 = vshrl.u32 %v239, 7
    %v241 = vsub.s32 4, %v240
    %v242 = vrot.slane %v234, %v241
    %v243 = vlaneseq
    %v244 = vshrl.u32 %v243, 7
    %v245 = vsub.s32 0, %v244
    %v246 = vrot.slane %v238, %v245
    %v247 = vlaneseq
    %v248 = vshrl.u32 %v247, 7
    %v249 = vsub.s32 0, %v248
    %v250 = vrot.slane %v242, %v249
    %vm251 = vcmp.eq.s32.totalorder %v246, %v61
    %vm252 = vcmp.eq.s32.totalorder %v250, %v61
    %vm253 = vcmp.eq.s32.totalorder %v246, %v62
    %vm254 = vcmp.eq.s32.totalorder %v250, %v62
    %vm255 = vcmp.eq.s32.totalorder %v246, %v63
    %vm256 = vcmp.eq.s32.totalorder %v250, %v63
    %vm257 = vcmp.eq.s32.totalorder %v246, %v64
    %vm258 = vcmp.eq.s32.totalorder %v250, %v64
    %vm259 = vcmp.eq.s32.totalorder %v246, %v65
    %vm260 = vcmp.eq.s32.totalorder %v250, %v65
    %vm261 = vcmp.eq.s32.totalorder %v246, %v66
    %vm262 = vcmp.eq.s32.totalorder %v250, %v66
    %vm263 = vcmp.eq.s32.totalorder %v246, %v67
    %vm264 = vcmp.eq.s32.totalorder %v250, %v67
    %vm265 = vcmp.eq.s32.totalorder %v246, %v68
    %vm266 = vcmp.eq.s32.totalorder %v250, %v68
    %vm267 = vcmp.eq.s32.totalorder %v246, %v69
    %vm268 = vcmp.eq.s32.totalorder %v250, %v69
    %vm269 = vcmp.eq.s32.totalorder %v246, %v70
    %vm270 = vcmp.eq.s32.totalorder %v250, %v70
    %vm271 = vcmp.eq.s32.totalorder %v246, %v71
    %vm272 = vcmp.eq.s32.totalorder %v250, %v71
    %vm273 = vcmp.eq.s32.totalorder %v246, %v72
    %vm274 = vcmp.eq.s32.totalorder %v250, %v72
    %vm275 = vcmp.eq.s32.totalorder %v246, %v73
    %vm276 = vcmp.eq.s32.totalorder %v250, %v73
    %vm277 = vcmp.eq.s32.totalorder %v246, %v74
    %vm278 = vcmp.eq.s32.totalorder %v250, %v74
    %vm279 = vcmp.eq.s32.totalorder %v246, %v75
    %vm280 = vcmp.eq.s32.totalorder %v250, %v75
    %vm281 = vcmp.eq.s32.totalorder %v246, %v76
    %vm282 = vcmp.eq.s32.totalorder %v250, %v76
    %v284 = vlaneseq
    %v285 = vshrl.u32 %v284, 7
    %v286 = vsub.s32 0, %v285
    %v287 = vrot.slane %v230, %v286
    %v288 = vlaneseq
    %v289 = vshrl.u32 %v288, 7
    %v290 = vsub.s32 4, %v289
    %v291 = vrot.slane %v230, %v290
    %v294 = vlaneseq
    %v295 = vshrl.u32 %v294, 7
    %v296 = vsub.s32 0, %v295
    %v297 = vrot.slane %v287, %v296
    %v298 = vlaneseq
    %v299 = vshrl.u32 %v298, 7
    %v300 = vsub.s32 0, %v299
    %v301 = vrot.slane %v291, %v300
    %v302 = vsel %vm251, %v297, 0.0
    %v303 = vsel %vm252, %v301, 0.0
    %v304 = vsel %vm253, %v297, 0.0
    %v305 = vsel %vm254, %v301, 0.0
    %v306 = vsel %vm255, %v297, 0.0
    %v307 = vsel %vm256, %v301, 0.0
    %v308 = vsel %vm257, %v297, 0.0
    %v309 = vsel %vm258, %v301, 0.0
    %v310 = vsel %vm259, %v297, 0.0
    %v311 = vsel %vm260, %v301, 0.0
    %v312 = vsel %vm261, %v297, 0.0
    %v313 = vsel %vm262, %v301, 0.0
    %v314 = vsel %vm263, %v297, 0.0
    %v315 = vsel %vm264, %v301, 0.0
    %v316 = vsel %vm265, %v297, 0.0
    %v317 = vsel %vm266, %v301, 0.0
    %v318 = vsel %vm267, %v297, 0.0
    %v319 = vsel %vm268, %v301, 0.0
    %v320 = vsel %vm269, %v297, 0.0
    %v321 = vsel %vm270, %v301, 0.0
    %v322 = vsel %vm271, %v297, 0.0
    %v323 = vsel %vm272, %v301, 0.0
    %v324 = vsel %vm273, %v297, 0.0
    %v325 = vsel %vm274, %v301, 0.0
    %v326 = vsel %vm275, %v297, 0.0
    %v327 = vsel %vm276, %v301, 0.0
    %v328 = vsel %vm277, %v297, 0.0
    %v329 = vsel %vm278, %v301, 0.0
    %v330 = vsel %vm279, %v297, 0.0
    %v331 = vsel %vm280, %v301, 0.0
    %v332 = vsel %vm281, %v297, 0.0
    %v333 = vsel %vm282, %v301, 0.0
    %v334 = vadd.f32 %v194, %v302
    %v335 = vadd.f32 %v195, %v303
    %v336 = vadd.f32 %v196, %v304
    %v337 = vadd.f32 %v197, %v305
    %v338 = vadd.f32 %v198, %v306
    %v339 = vadd.f32 %v199, %v307
    %v340 = vadd.f32 %v200, %v308
    %v341 = vadd.f32 %v201, %v309
    %v342 = vadd.f32 %v202, %v310
    %v343 = vadd.f32 %v203, %v311
    %v344 = vadd.f32 %v204, %v312
    %v345 = vadd.f32 %v205, %v313
    %v346 = vadd.f32 %v206, %v314
    %v347 = vadd.f32 %v207, %v315
    %v348 = vadd.f32 %v208, %v316
    %v349 = vadd.f32 %v209, %v317
    %v350 = vadd.f32 %v210, %v318
    %v351 = vadd.f32 %v211, %v319
    %v352 = vadd.f32 %v212, %v320
    %v353 = vadd.f32 %v213, %v321
    %v354 = vadd.f32 %v214, %v322
    %v355 = vadd.f32 %v215, %v323
    %v356 = vadd.f32 %v216, %v324
    %v357 = vadd.f32 %v217, %v325
    %v358 = vadd.f32 %v218, %v326
    %v359 = vadd.f32 %v219, %v327
    %v360 = vadd.f32 %v220, %v328
    %v361 = vadd.f32 %v221, %v329
    %v362 = vadd.f32 %v222, %v330
    %v363 = vadd.f32 %v223, %v331
    %v364 = vadd.f32 %v224, %v332
    %v365 = vadd.f32 %v225, %v333
    %v366 = vrot.slane %v44, 5
    %v367 = vrot.slane %v366, 4
    %v369 = vmul.f32 %v45, %v367
    %v370 = vmul.f32 %v369, %v84
    %v371 = vrot.slane %v57, 5
    %v372 = vrot.slane %v371, 4
    %v373 = vadd.s32 %v51, %v372
    %v374 = vadd.s32 %v373, %v91
    %v375 = vsub.s32 %v374, %v93
    %v376 = vlaneseq
    %v377 = vshrl.u32 %v376, 7
    %v378 = vsub.s32 0, %v377
    %v379 = vrot.slane %v375, %v378
    %v380 = vlaneseq
    %v381 = vshrl.u32 %v380, 7
    %v382 = vsub.s32 4, %v381
    %v383 = vrot.slane %v375, %v382
    %v384 = vlaneseq
    %v385 = vshrl.u32 %v384, 7
    %v386 = vsub.s32 0, %v385
    %v387 = vrot.slane %v379, %v386
    %v388 = vlaneseq
    %v389 = vshrl.u32 %v388, 7
    %v390 = vsub.s32 0, %v389
    %v391 = vrot.slane %v383, %v390
    %vm392 = vcmp.eq.s32.totalorder %v387, %v61
    %vm393 = vcmp.eq.s32.totalorder %v391, %v61
    %vm394 = vcmp.eq.s32.totalorder %v387, %v62
    %vm395 = vcmp.eq.s32.totalorder %v391, %v62
    %vm396 = vcmp.eq.s32.totalorder %v387, %v63
    %vm397 = vcmp.eq.s32.totalorder %v391, %v63
    %vm398 = vcmp.eq.s32.totalorder %v387, %v64
    %vm399 = vcmp.eq.s32.totalorder %v391, %v64
    %vm400 = vcmp.eq.s32.totalorder %v387, %v65
    %vm401 = vcmp.eq.s32.totalorder %v391, %v65
    %vm402 = vcmp.eq.s32.totalorder %v387, %v66
    %vm403 = vcmp.eq.s32.totalorder %v391, %v66
    %vm404 = vcmp.eq.s32.totalorder %v387, %v67
    %vm405 = vcmp.eq.s32.totalorder %v391, %v67
    %vm406 = vcmp.eq.s32.totalorder %v387, %v68
    %vm407 = vcmp.eq.s32.totalorder %v391, %v68
    %vm408 = vcmp.eq.s32.totalorder %v387, %v69
    %vm409 = vcmp.eq.s32.totalorder %v391, %v69
    %vm410 = vcmp.eq.s32.totalorder %v387, %v70
    %vm411 = vcmp.eq.s32.totalorder %v391, %v70
    %vm412 = vcmp.eq.s32.totalorder %v387, %v71
    %vm413 = vcmp.eq.s32.totalorder %v391, %v71
    %vm414 = vcmp.eq.s32.totalorder %v387, %v72
    %vm415 = vcmp.eq.s32.totalorder %v391, %v72
    %vm416 = vcmp.eq.s32.totalorder %v387, %v73
    %vm417 = vcmp.eq.s32.totalorder %v391, %v73
    %vm418 = vcmp.eq.s32.totalorder %v387, %v74
    %vm419 = vcmp.eq.s32.totalorder %v391, %v74
    %vm420 = vcmp.eq.s32.totalorder %v387, %v75
    %vm421 = vcmp.eq.s32.totalorder %v391, %v75
    %vm422 = vcmp.eq.s32.totalorder %v387, %v76
    %vm423 = vcmp.eq.s32.totalorder %v391, %v76
    %v425 = vlaneseq
    %v426 = vshrl.u32 %v425, 7
    %v427 = vsub.s32 0, %v426
    %v428 = vrot.slane %v370, %v427
    %v429 = vlaneseq
    %v430 = vshrl.u32 %v429, 7
    %v431 = vsub.s32 4, %v430
    %v432 = vrot.slane %v370, %v431
    %v435 = vlaneseq
    %v436 = vshrl.u32 %v435, 7
    %v437 = vsub.s32 0, %v436
    %v438 = vrot.slane %v428, %v437
    %v439 = vlaneseq
    %v440 = vshrl.u32 %v439, 7
    %v441 = vsub.s32 0, %v440
    %v442 = vrot.slane %v432, %v441
    %v443 = vsel %vm392, %v438, 0.0
    %v444 = vsel %vm393, %v442, 0.0
    %v445 = vsel %vm394, %v438, 0.0
    %v446 = vsel %vm395, %v442, 0.0
    %v447 = vsel %vm396, %v438, 0.0
    %v448 = vsel %vm397, %v442, 0.0
    %v449 = vsel %vm398, %v438, 0.0
    %v450 = vsel %vm399, %v442, 0.0
    %v451 = vsel %vm400, %v438, 0.0
    %v452 = vsel %vm401, %v442, 0.0
    %v453 = vsel %vm402, %v438, 0.0
    %v454 = vsel %vm403, %v442, 0.0
    %v455 = vsel %vm404, %v438, 0.0
    %v456 = vsel %vm405, %v442, 0.0
    %v457 = vsel %vm406, %v438, 0.0
    %v458 = vsel %vm407, %v442, 0.0
    %v459 = vsel %vm408, %v438, 0.0
    %v460 = vsel %vm409, %v442, 0.0
    %v461 = vsel %vm410, %v438, 0.0
    %v462 = vsel %vm411, %v442, 0.0
    %v463 = vsel %vm412, %v438, 0.0
    %v464 = vsel %vm413, %v442, 0.0
    %v465 = vsel %vm414, %v438, 0.0
    %v466 = vsel %vm415, %v442, 0.0
    %v467 = vsel %vm416, %v438, 0.0
    %v468 = vsel %vm417, %v442, 0.0
    %v469 = vsel %vm418, %v438, 0.0
    %v470 = vsel %vm419, %v442, 0.0
    %v471 = vsel %vm420, %v438, 0.0
    %v472 = vsel %vm421, %v442, 0.0
    %v473 = vsel %vm422, %v438, 0.0
    %v474 = vsel %vm423, %v442, 0.0
    %v475 = vadd.f32 %v334, %v443
    %v476 = vadd.f32 %v335, %v444
    %v477 = vadd.f32 %v336, %v445
    %v478 = vadd.f32 %v337, %v446
    %v479 = vadd.f32 %v338, %v447
    %v480 = vadd.f32 %v339, %v448
    %v481 = vadd.f32 %v340, %v449
    %v482 = vadd.f32 %v341, %v450
    %v483 = vadd.f32 %v342, %v451
    %v484 = vadd.f32 %v343, %v452
    %v485 = vadd.f32 %v344, %v453
    %v486 = vadd.f32 %v345, %v454
    %v487 = vadd.f32 %v346, %v455
    %v488 = vadd.f32 %v347, %v456
    %v489 = vadd.f32 %v348, %v457
    %v490 = vadd.f32 %v349, %v458
    %v491 = vadd.f32 %v350, %v459
    %v492 = vadd.f32 %v351, %v460
    %v493 = vadd.f32 %v352, %v461
    %v494 = vadd.f32 %v353, %v462
    %v495 = vadd.f32 %v354, %v463
    %v496 = vadd.f32 %v355, %v464
    %v497 = vadd.f32 %v356, %v465
    %v498 = vadd.f32 %v357, %v466
    %v499 = vadd.f32 %v358, %v467
    %v500 = vadd.f32 %v359, %v468
    %v501 = vadd.f32 %v360, %v469
    %v502 = vadd.f32 %v361, %v470
    %v503 = vadd.f32 %v362, %v471
    %v504 = vadd.f32 %v363, %v472
    %v505 = vadd.f32 %v364, %v473
    %v506 = vadd.f32 %v365, %v474
    %v507 = vmul.f32 %v369, %v228
    %v508 = vadd.s32 %v373, %v232
    %v509 = vsub.s32 %v508, %v93
    %v510 = vlaneseq
    %v511 = vshrl.u32 %v510, 7
    %v512 = vsub.s32 0, %v511
    %v513 = vrot.slane %v509, %v512
    %v514 = vlaneseq
    %v515 = vshrl.u32 %v514, 7
    %v516 = vsub.s32 4, %v515
    %v517 = vrot.slane %v509, %v516
    %v518 = vlaneseq
    %v519 = vshrl.u32 %v518, 7
    %v520 = vsub.s32 0, %v519
    %v521 = vrot.slane %v513, %v520
    %v522 = vlaneseq
    %v523 = vshrl.u32 %v522, 7
    %v524 = vsub.s32 0, %v523
    %v525 = vrot.slane %v517, %v524
    %vm526 = vcmp.eq.s32.totalorder %v521, %v61
    %vm527 = vcmp.eq.s32.totalorder %v525, %v61
    %vm528 = vcmp.eq.s32.totalorder %v521, %v62
    %vm529 = vcmp.eq.s32.totalorder %v525, %v62
    %vm530 = vcmp.eq.s32.totalorder %v521, %v63
    %vm531 = vcmp.eq.s32.totalorder %v525, %v63
    %vm532 = vcmp.eq.s32.totalorder %v521, %v64
    %vm533 = vcmp.eq.s32.totalorder %v525, %v64
    %vm534 = vcmp.eq.s32.totalorder %v521, %v65
    %vm535 = vcmp.eq.s32.totalorder %v525, %v65
    %vm536 = vcmp.eq.s32.totalorder %v521, %v66
    %vm537 = vcmp.eq.s32.totalorder %v525, %v66
    %vm538 = vcmp.eq.s32.totalorder %v521, %v67
    %vm539 = vcmp.eq.s32.totalorder %v525, %v67
    %vm540 = vcmp.eq.s32.totalorder %v521, %v68
    %vm541 = vcmp.eq.s32.totalorder %v525, %v68
    %vm542 = vcmp.eq.s32.totalorder %v521, %v69
    %vm543 = vcmp.eq.s32.totalorder %v525, %v69
    %vm544 = vcmp.eq.s32.totalorder %v521, %v70
    %vm545 = vcmp.eq.s32.totalorder %v525, %v70
    %vm546 = vcmp.eq.s32.totalorder %v521, %v71
    %vm547 = vcmp.eq.s32.totalorder %v525, %v71
    %vm548 = vcmp.eq.s32.totalorder %v521, %v72
    %vm549 = vcmp.eq.s32.totalorder %v525, %v72
    %vm550 = vcmp.eq.s32.totalorder %v521, %v73
    %vm551 = vcmp.eq.s32.totalorder %v525, %v73
    %vm552 = vcmp.eq.s32.totalorder %v521, %v74
    %vm553 = vcmp.eq.s32.totalorder %v525, %v74
    %vm554 = vcmp.eq.s32.totalorder %v521, %v75
    %vm555 = vcmp.eq.s32.totalorder %v525, %v75
    %vm556 = vcmp.eq.s32.totalorder %v521, %v76
    %vm557 = vcmp.eq.s32.totalorder %v525, %v76
    %v559 = vlaneseq
    %v560 = vshrl.u32 %v559, 7
    %v561 = vsub.s32 0, %v560
    %v562 = vrot.slane %v507, %v561
    %v563 = vlaneseq
    %v564 = vshrl.u32 %v563, 7
    %v565 = vsub.s32 4, %v564
    %v566 = vrot.slane %v507, %v565
    %v569 = vlaneseq
    %v570 = vshrl.u32 %v569, 7
    %v571 = vsub.s32 0, %v570
    %v572 = vrot.slane %v562, %v571
    %v573 = vlaneseq
    %v574 = vshrl.u32 %v573, 7
    %v575 = vsub.s32 0, %v574
    %v576 = vrot.slane %v566, %v575
    %v577 = vsel %vm526, %v572, 0.0
    %v578 = vsel %vm527, %v576, 0.0
    %v579 = vsel %vm528, %v572, 0.0
    %v580 = vsel %vm529, %v576, 0.0
    %v581 = vsel %vm530, %v572, 0.0
    %v582 = vsel %vm531, %v576, 0.0
    %v583 = vsel %vm532, %v572, 0.0
    %v584 = vsel %vm533, %v576, 0.0
    %v585 = vsel %vm534, %v572, 0.0
    %v586 = vsel %vm535, %v576, 0.0
    %v587 = vsel %vm536, %v572, 0.0
    %v588 = vsel %vm537, %v576, 0.0
    %v589 = vsel %vm538, %v572, 0.0
    %v590 = vsel %vm539, %v576, 0.0
    %v591 = vsel %vm540, %v572, 0.0
    %v592 = vsel %vm541, %v576, 0.0
    %v593 = vsel %vm542, %v572, 0.0
    %v594 = vsel %vm543, %v576, 0.0
    %v595 = vsel %vm544, %v572, 0.0
    %v596 = vsel %vm545, %v576, 0.0
    %v597 = vsel %vm546, %v572, 0.0
    %v598 = vsel %vm547, %v576, 0.0
    %v599 = vsel %vm548, %v572, 0.0
    %v600 = vsel %vm549, %v576, 0.0
    %v601 = vsel %vm550, %v572, 0.0
    %v602 = vsel %vm551, %v576, 0.0
    %v603 = vsel %vm552, %v572, 0.0
    %v604 = vsel %vm553, %v576, 0.0
    %v605 = vsel %vm554, %v572, 0.0
    %v606 = vsel %vm555, %v576, 0.0
    %v607 = vsel %vm556, %v572, 0.0
    %v608 = vsel %vm557, %v576, 0.0
    %v609 = vadd.f32 %v475, %v577
    %v610 = vadd.f32 %v476, %v578
    %v611 = vadd.f32 %v477, %v579
    %v612 = vadd.f32 %v478, %v580
    %v613 = vadd.f32 %v479, %v581
    %v614 = vadd.f32 %v480, %v582
    %v615 = vadd.f32 %v481, %v583
    %v616 = vadd.f32 %v482, %v584
    %v617 = vadd.f32 %v483, %v585
    %v618 = vadd.f32 %v484, %v586
    %v619 = vadd.f32 %v485, %v587
    %v620 = vadd.f32 %v486, %v588
    %v621 = vadd.f32 %v487, %v589
    %v622 = vadd.f32 %v488, %v590
    %v623 = vadd.f32 %v489, %v591
    %v624 = vadd.f32 %v490, %v592
    %v625 = vadd.f32 %v491, %v593
    %v626 = vadd.f32 %v492, %v594
    %v627 = vadd.f32 %v493, %v595
    %v628 = vadd.f32 %v494, %v596
    %v629 = vadd.f32 %v495, %v597
    %v630 = vadd.f32 %v496, %v598
    %v631 = vadd.f32 %v497, %v599
    %v632 = vadd.f32 %v498, %v600
    %v633 = vadd.f32 %v499, %v601
    %v634 = vadd.f32 %v500, %v602
    %v635 = vadd.f32 %v501, %v603
    %v636 = vadd.f32 %v502, %v604
    %v637 = vadd.f32 %v503, %v605
    %v638 = vadd.f32 %v504, %v606
    %v639 = vadd.f32 %v505, %v607
    %v640 = vadd.f32 %v506, %v608
    %v641 = vmul.f32 %v44, %v80
    %v642 = vmul.f32 %v641, %v84
    %v643 = vadd.s32 %v55, %v88
    %v644 = vadd.s32 %v643, %v91
    %v645 = vsub.s32 %v644, %v93
    %v646 = vlaneseq
    %v647 = vshrl.u32 %v646, 7
    %v648 = vsub.s32 0, %v647
    %v649 = vrot.slane %v645, %v648
    %v650 = vlaneseq
    %v651 = vshrl.u32 %v650, 7
    %v652 = vsub.s32 4, %v651
    %v653 = vrot.slane %v645, %v652
    %v654 = vlaneseq
    %v655 = vshrl.u32 %v654, 7
    %v656 = vsub.s32 0, %v655
    %v657 = vrot.slane %v649, %v656
    %v658 = vlaneseq
    %v659 = vshrl.u32 %v658, 7
    %v660 = vsub.s32 0, %v659
    %v661 = vrot.slane %v653, %v660
    %vm662 = vcmp.eq.s32.totalorder %v657, %v61
    %vm663 = vcmp.eq.s32.totalorder %v661, %v61
    %vm664 = vcmp.eq.s32.totalorder %v657, %v62
    %vm665 = vcmp.eq.s32.totalorder %v661, %v62
    %vm666 = vcmp.eq.s32.totalorder %v657, %v63
    %vm667 = vcmp.eq.s32.totalorder %v661, %v63
    %vm668 = vcmp.eq.s32.totalorder %v657, %v64
    %vm669 = vcmp.eq.s32.totalorder %v661, %v64
    %vm670 = vcmp.eq.s32.totalorder %v657, %v65
    %vm671 = vcmp.eq.s32.totalorder %v661, %v65
    %vm672 = vcmp.eq.s32.totalorder %v657, %v66
    %vm673 = vcmp.eq.s32.totalorder %v661, %v66
    %vm674 = vcmp.eq.s32.totalorder %v657, %v67
    %vm675 = vcmp.eq.s32.totalorder %v661, %v67
    %vm676 = vcmp.eq.s32.totalorder %v657, %v68
    %vm677 = vcmp.eq.s32.totalorder %v661, %v68
    %vm678 = vcmp.eq.s32.totalorder %v657, %v69
    %vm679 = vcmp.eq.s32.totalorder %v661, %v69
    %vm680 = vcmp.eq.s32.totalorder %v657, %v70
    %vm681 = vcmp.eq.s32.totalorder %v661, %v70
    %vm682 = vcmp.eq.s32.totalorder %v657, %v71
    %vm683 = vcmp.eq.s32.totalorder %v661, %v71
    %vm684 = vcmp.eq.s32.totalorder %v657, %v72
    %vm685 = vcmp.eq.s32.totalorder %v661, %v72
    %vm686 = vcmp.eq.s32.totalorder %v657, %v73
    %vm687 = vcmp.eq.s32.totalorder %v661, %v73
    %vm688 = vcmp.eq.s32.totalorder %v657, %v74
    %vm689 = vcmp.eq.s32.totalorder %v661, %v74
    %vm690 = vcmp.eq.s32.totalorder %v657, %v75
    %vm691 = vcmp.eq.s32.totalorder %v661, %v75
    %vm692 = vcmp.eq.s32.totalorder %v657, %v76
    %vm693 = vcmp.eq.s32.totalorder %v661, %v76
    %v695 = vlaneseq
    %v696 = vshrl.u32 %v695, 7
    %v697 = vsub.s32 0, %v696
    %v698 = vrot.slane %v642, %v697
    %v699 = vlaneseq
    %v700 = vshrl.u32 %v699, 7
    %v701 = vsub.s32 4, %v700
    %v702 = vrot.slane %v642, %v701
    %v705 = vlaneseq
    %v706 = vshrl.u32 %v705, 7
    %v707 = vsub.s32 0, %v706
    %v708 = vrot.slane %v698, %v707
    %v709 = vlaneseq
    %v710 = vshrl.u32 %v709, 7
    %v711 = vsub.s32 0, %v710
    %v712 = vrot.slane %v702, %v711
    %v713 = vsel %vm662, %v708, 0.0
    %v714 = vsel %vm663, %v712, 0.0
    %v715 = vsel %vm664, %v708, 0.0
    %v716 = vsel %vm665, %v712, 0.0
    %v717 = vsel %vm666, %v708, 0.0
    %v718 = vsel %vm667, %v712, 0.0
    %v719 = vsel %vm668, %v708, 0.0
    %v720 = vsel %vm669, %v712, 0.0
    %v721 = vsel %vm670, %v708, 0.0
    %v722 = vsel %vm671, %v712, 0.0
    %v723 = vsel %vm672, %v708, 0.0
    %v724 = vsel %vm673, %v712, 0.0
    %v725 = vsel %vm674, %v708, 0.0
    %v726 = vsel %vm675, %v712, 0.0
    %v727 = vsel %vm676, %v708, 0.0
    %v728 = vsel %vm677, %v712, 0.0
    %v729 = vsel %vm678, %v708, 0.0
    %v730 = vsel %vm679, %v712, 0.0
    %v731 = vsel %vm680, %v708, 0.0
    %v732 = vsel %vm681, %v712, 0.0
    %v733 = vsel %vm682, %v708, 0.0
    %v734 = vsel %vm683, %v712, 0.0
    %v735 = vsel %vm684, %v708, 0.0
    %v736 = vsel %vm685, %v712, 0.0
    %v737 = vsel %vm686, %v708, 0.0
    %v738 = vsel %vm687, %v712, 0.0
    %v739 = vsel %vm688, %v708, 0.0
    %v740 = vsel %vm689, %v712, 0.0
    %v741 = vsel %vm690, %v708, 0.0
    %v742 = vsel %vm691, %v712, 0.0
    %v743 = vsel %vm692, %v708, 0.0
    %v744 = vsel %vm693, %v712, 0.0
    %v745 = vadd.f32 %v609, %v713
    %v746 = vadd.f32 %v610, %v714
    %v747 = vadd.f32 %v611, %v715
    %v748 = vadd.f32 %v612, %v716
    %v749 = vadd.f32 %v613, %v717
    %v750 = vadd.f32 %v614, %v718
    %v751 = vadd.f32 %v615, %v719
    %v752 = vadd.f32 %v616, %v720
    %v753 = vadd.f32 %v617, %v721
    %v754 = vadd.f32 %v618, %v722
    %v755 = vadd.f32 %v619, %v723
    %v756 = vadd.f32 %v620, %v724
    %v757 = vadd.f32 %v621, %v725
    %v758 = vadd.f32 %v622, %v726
    %v759 = vadd.f32 %v623, %v727
    %v760 = vadd.f32 %v624, %v728
    %v761 = vadd.f32 %v625, %v729
    %v762 = vadd.f32 %v626, %v730
    %v763 = vadd.f32 %v627, %v731
    %v764 = vadd.f32 %v628, %v732
    %v765 = vadd.f32 %v629, %v733
    %v766 = vadd.f32 %v630, %v734
    %v767 = vadd.f32 %v631, %v735
    %v768 = vadd.f32 %v632, %v736
    %v769 = vadd.f32 %v633, %v737
    %v770 = vadd.f32 %v634, %v738
    %v771 = vadd.f32 %v635, %v739
    %v772 = vadd.f32 %v636, %v740
    %v773 = vadd.f32 %v637, %v741
    %v774 = vadd.f32 %v638, %v742
    %v775 = vadd.f32 %v639, %v743
    %v776 = vadd.f32 %v640, %v744
    %v777 = vmul.f32 %v641, %v228
    %v778 = vadd.s32 %v643, %v232
    %v779 = vsub.s32 %v778, %v93
    %v780 = vlaneseq
    %v781 = vshrl.u32 %v780, 7
    %v782 = vsub.s32 0, %v781
    %v783 = vrot.slane %v779, %v782
    %v784 = vlaneseq
    %v785 = vshrl.u32 %v784, 7
    %v786 = vsub.s32 4, %v785
    %v787 = vrot.slane %v779, %v786
    %v788 = vlaneseq
    %v789 = vshrl.u32 %v788, 7
    %v790 = vsub.s32 0, %v789
    %v791 = vrot.slane %v783, %v790
    %v792 = vlaneseq
    %v793 = vshrl.u32 %v792, 7
    %v794 = vsub.s32 0, %v793
    %v795 = vrot.slane %v787, %v794
    %vm796 = vcmp.eq.s32.totalorder %v791, %v61
    %vm797 = vcmp.eq.s32.totalorder %v795, %v61
    %vm798 = vcmp.eq.s32.totalorder %v791, %v62
    %vm799 = vcmp.eq.s32.totalorder %v795, %v62
    %vm800 = vcmp.eq.s32.totalorder %v791, %v63
    %vm801 = vcmp.eq.s32.totalorder %v795, %v63
    %vm802 = vcmp.eq.s32.totalorder %v791, %v64
    %vm803 = vcmp.eq.s32.totalorder %v795, %v64
    %vm804 = vcmp.eq.s32.totalorder %v791, %v65
    %vm805 = vcmp.eq.s32.totalorder %v795, %v65
    %vm806 = vcmp.eq.s32.totalorder %v791, %v66
    %vm807 = vcmp.eq.s32.totalorder %v795, %v66
    %vm808 = vcmp.eq.s32.totalorder %v791, %v67
    %vm809 = vcmp.eq.s32.totalorder %v795, %v67
    %vm810 = vcmp.eq.s32.totalorder %v791, %v68
    %vm811 = vcmp.eq.s32.totalorder %v795, %v68
    %vm812 = vcmp.eq.s32.totalorder %v791, %v69
    %vm813 = vcmp.eq.s32.totalorder %v795, %v69
    %vm814 = vcmp.eq.s32.totalorder %v791, %v70
    %vm815 = vcmp.eq.s32.totalorder %v795, %v70
    %vm816 = vcmp.eq.s32.totalorder %v791, %v71
    %vm817 = vcmp.eq.s32.totalorder %v795, %v71
    %vm818 = vcmp.eq.s32.totalorder %v791, %v72
    %vm819 = vcmp.eq.s32.totalorder %v795, %v72
    %vm820 = vcmp.eq.s32.totalorder %v791, %v73
    %vm821 = vcmp.eq.s32.totalorder %v795, %v73
    %vm822 = vcmp.eq.s32.totalorder %v791, %v74
    %vm823 = vcmp.eq.s32.totalorder %v795, %v74
    %vm824 = vcmp.eq.s32.totalorder %v791, %v75
    %vm825 = vcmp.eq.s32.totalorder %v795, %v75
    %vm826 = vcmp.eq.s32.totalorder %v791, %v76
    %vm827 = vcmp.eq.s32.totalorder %v795, %v76
    %v829 = vlaneseq
    %v830 = vshrl.u32 %v829, 7
    %v831 = vsub.s32 0, %v830
    %v832 = vrot.slane %v777, %v831
    %v833 = vlaneseq
    %v834 = vshrl.u32 %v833, 7
    %v835 = vsub.s32 4, %v834
    %v836 = vrot.slane %v777, %v835
    %v839 = vlaneseq
    %v840 = vshrl.u32 %v839, 7
    %v841 = vsub.s32 0, %v840
    %v842 = vrot.slane %v832, %v841
    %v843 = vlaneseq
    %v844 = vshrl.u32 %v843, 7
    %v845 = vsub.s32 0, %v844
    %v846 = vrot.slane %v836, %v845
    %v847 = vsel %vm796, %v842, 0.0
    %v848 = vsel %vm797, %v846, 0.0
    %v849 = vsel %vm798, %v842, 0.0
    %v850 = vsel %vm799, %v846, 0.0
    %v851 = vsel %vm800, %v842, 0.0
    %v852 = vsel %vm801, %v846, 0.0
    %v853 = vsel %vm802, %v842, 0.0
    %v854 = vsel %vm803, %v846, 0.0
    %v855 = vsel %vm804, %v842, 0.0
    %v856 = vsel %vm805, %v846, 0.0
    %v857 = vsel %vm806, %v842, 0.0
    %v858 = vsel %vm807, %v846, 0.0
    %v859 = vsel %vm808, %v842, 0.0
    %v860 = vsel %vm809, %v846, 0.0
    %v861 = vsel %vm810, %v842, 0.0
    %v862 = vsel %vm811, %v846, 0.0
    %v863 = vsel %vm812, %v842, 0.0
    %v864 = vsel %vm813, %v846, 0.0
    %v865 = vsel %vm814, %v842, 0.0
    %v866 = vsel %vm815, %v846, 0.0
    %v867 = vsel %vm816, %v842, 0.0
    %v868 = vsel %vm817, %v846, 0.0
    %v869 = vsel %vm818, %v842, 0.0
    %v870 = vsel %vm819, %v846, 0.0
    %v871 = vsel %vm820, %v842, 0.0
    %v872 = vsel %vm821, %v846, 0.0
    %v873 = vsel %vm822, %v842, 0.0
    %v874 = vsel %vm823, %v846, 0.0
    %v875 = vsel %vm824, %v842, 0.0
    %v876 = vsel %vm825, %v846, 0.0
    %v877 = vsel %vm826, %v842, 0.0
    %v878 = vsel %vm827, %v846, 0.0
    %v879 = vadd.f32 %v745, %v847
    %v880 = vadd.f32 %v746, %v848
    %v881 = vadd.f32 %v747, %v849
    %v882 = vadd.f32 %v748, %v850
    %v883 = vadd.f32 %v749, %v851
    %v884 = vadd.f32 %v750, %v852
    %v885 = vadd.f32 %v751, %v853
    %v886 = vadd.f32 %v752, %v854
    %v887 = vadd.f32 %v753, %v855
    %v888 = vadd.f32 %v754, %v856
    %v889 = vadd.f32 %v755, %v857
    %v890 = vadd.f32 %v756, %v858
    %v891 = vadd.f32 %v757, %v859
    %v892 = vadd.f32 %v758, %v860
    %v893 = vadd.f32 %v759, %v861
    %v894 = vadd.f32 %v760, %v862
    %v895 = vadd.f32 %v761, %v863
    %v896 = vadd.f32 %v762, %v864
    %v897 = vadd.f32 %v763, %v865
    %v898 = vadd.f32 %v764, %v866
    %v899 = vadd.f32 %v765, %v867
    %v900 = vadd.f32 %v766, %v868
    %v901 = vadd.f32 %v767, %v869
    %v902 = vadd.f32 %v768, %v870
    %v903 = vadd.f32 %v769, %v871
    %v904 = vadd.f32 %v770, %v872
    %v905 = vadd.f32 %v771, %v873
    %v906 = vadd.f32 %v772, %v874
    %v907 = vadd.f32 %v773, %v875
    %v908 = vadd.f32 %v774, %v876
    %v909 = vadd.f32 %v775, %v877
    %v910 = vadd.f32 %v776, %v878
    %v911 = vmul.f32 %v44, %v367
    %v912 = vmul.f32 %v911, %v84
    %v913 = vadd.s32 %v55, %v372
    %v914 = vadd.s32 %v913, %v91
    %v915 = vsub.s32 %v914, %v93
    %v916 = vlaneseq
    %v917 = vshrl.u32 %v916, 7
    %v918 = vsub.s32 0, %v917
    %v919 = vrot.slane %v915, %v918
    %v920 = vlaneseq
    %v921 = vshrl.u32 %v920, 7
    %v922 = vsub.s32 4, %v921
    %v923 = vrot.slane %v915, %v922
    %v924 = vlaneseq
    %v925 = vshrl.u32 %v924, 7
    %v926 = vsub.s32 0, %v925
    %v927 = vrot.slane %v919, %v926
    %v928 = vlaneseq
    %v929 = vshrl.u32 %v928, 7
    %v930 = vsub.s32 0, %v929
    %v931 = vrot.slane %v923, %v930
    %vm932 = vcmp.eq.s32.totalorder %v927, %v61
    %vm933 = vcmp.eq.s32.totalorder %v931, %v61
    %vm934 = vcmp.eq.s32.totalorder %v927, %v62
    %vm935 = vcmp.eq.s32.totalorder %v931, %v62
    %vm936 = vcmp.eq.s32.totalorder %v927, %v63
    %vm937 = vcmp.eq.s32.totalorder %v931, %v63
    %vm938 = vcmp.eq.s32.totalorder %v927, %v64
    %vm939 = vcmp.eq.s32.totalorder %v931, %v64
    %vm940 = vcmp.eq.s32.totalorder %v927, %v65
    %vm941 = vcmp.eq.s32.totalorder %v931, %v65
    %vm942 = vcmp.eq.s32.totalorder %v927, %v66
    %vm943 = vcmp.eq.s32.totalorder %v931, %v66
    %vm944 = vcmp.eq.s32.totalorder %v927, %v67
    %vm945 = vcmp.eq.s32.totalorder %v931, %v67
    %vm946 = vcmp.eq.s32.totalorder %v927, %v68
    %vm947 = vcmp.eq.s32.totalorder %v931, %v68
    %vm948 = vcmp.eq.s32.totalorder %v927, %v69
    %vm949 = vcmp.eq.s32.totalorder %v931, %v69
    %vm950 = vcmp.eq.s32.totalorder %v927, %v70
    %vm951 = vcmp.eq.s32.totalorder %v931, %v70
    %vm952 = vcmp.eq.s32.totalorder %v927, %v71
    %vm953 = vcmp.eq.s32.totalorder %v931, %v71
    %vm954 = vcmp.eq.s32.totalorder %v927, %v72
    %vm955 = vcmp.eq.s32.totalorder %v931, %v72
    %vm956 = vcmp.eq.s32.totalorder %v927, %v73
    %vm957 = vcmp.eq.s32.totalorder %v931, %v73
    %vm958 = vcmp.eq.s32.totalorder %v927, %v74
    %vm959 = vcmp.eq.s32.totalorder %v931, %v74
    %vm960 = vcmp.eq.s32.totalorder %v927, %v75
    %vm961 = vcmp.eq.s32.totalorder %v931, %v75
    %vm962 = vcmp.eq.s32.totalorder %v927, %v76
    %vm963 = vcmp.eq.s32.totalorder %v931, %v76
    %v965 = vlaneseq
    %v966 = vshrl.u32 %v965, 7
    %v967 = vsub.s32 0, %v966
    %v968 = vrot.slane %v912, %v967
    %v969 = vlaneseq
    %v970 = vshrl.u32 %v969, 7
    %v971 = vsub.s32 4, %v970
    %v972 = vrot.slane %v912, %v971
    %v975 = vlaneseq
    %v976 = vshrl.u32 %v975, 7
    %v977 = vsub.s32 0, %v976
    %v978 = vrot.slane %v968, %v977
    %v979 = vlaneseq
    %v980 = vshrl.u32 %v979, 7
    %v981 = vsub.s32 0, %v980
    %v982 = vrot.slane %v972, %v981
    %v983 = vsel %vm932, %v978, 0.0
    %v984 = vsel %vm933, %v982, 0.0
    %v985 = vsel %vm934, %v978, 0.0
    %v986 = vsel %vm935, %v982, 0.0
    %v987 = vsel %vm936, %v978, 0.0
    %v988 = vsel %vm937, %v982, 0.0
    %v989 = vsel %vm938, %v978, 0.0
    %v990 = vsel %vm939, %v982, 0.0
    %v991 = vsel %vm940, %v978, 0.0
    %v992 = vsel %vm941, %v982, 0.0
    %v993 = vsel %vm942, %v978, 0.0
    %v994 = vsel %vm943, %v982, 0.0
    %v995 = vsel %vm944, %v978, 0.0
    %v996 = vsel %vm945, %v982, 0.0
    %v997 = vsel %vm946, %v978, 0.0
    %v998 = vsel %vm947, %v982, 0.0
    %v999 = vsel %vm948, %v978, 0.0
    %v1000 = vsel %vm949, %v982, 0.0
    %v1001 = vsel %vm950, %v978, 0.0
    %v1002 = vsel %vm951, %v982, 0.0
    %v1003 = vsel %vm952, %v978, 0.0
    %v1004 = vsel %vm953, %v982, 0.0
    %v1005 = vsel %vm954, %v978, 0.0
    %v1006 = vsel %vm955, %v982, 0.0
    %v1007 = vsel %vm956, %v978, 0.0
    %v1008 = vsel %vm957, %v982, 0.0
    %v1009 = vsel %vm958, %v978, 0.0
    %v1010 = vsel %vm959, %v982, 0.0
    %v1011 = vsel %vm960, %v978, 0.0
    %v1012 = vsel %vm961, %v982, 0.0
    %v1013 = vsel %vm962, %v978, 0.0
    %v1014 = vsel %vm963, %v982, 0.0
    %v1015 = vadd.f32 %v879, %v983
    %v1016 = vadd.f32 %v880, %v984
    %v1017 = vadd.f32 %v881, %v985
    %v1018 = vadd.f32 %v882, %v986
    %v1019 = vadd.f32 %v883, %v987
    %v1020 = vadd.f32 %v884, %v988
    %v1021 = vadd.f32 %v885, %v989
    %v1022 = vadd.f32 %v886, %v990
    %v1023 = vadd.f32 %v887, %v991
    %v1024 = vadd.f32 %v888, %v992
    %v1025 = vadd.f32 %v889, %v993
    %v1026 = vadd.f32 %v890, %v994
    %v1027 = vadd.f32 %v891, %v995
    %v1028 = vadd.f32 %v892, %v996
    %v1029 = vadd.f32 %v893, %v997
    %v1030 = vadd.f32 %v894, %v998
    %v1031 = vadd.f32 %v895, %v999
    %v1032 = vadd.f32 %v896, %v1000
    %v1033 = vadd.f32 %v897, %v1001
    %v1034 = vadd.f32 %v898, %v1002
    %v1035 = vadd.f32 %v899, %v1003
    %v1036 = vadd.f32 %v900, %v1004
    %v1037 = vadd.f32 %v901, %v1005
    %v1038 = vadd.f32 %v902, %v1006
    %v1039 = vadd.f32 %v903, %v1007
    %v1040 = vadd.f32 %v904, %v1008
    %v1041 = vadd.f32 %v905, %v1009
    %v1042 = vadd.f32 %v906, %v1010
    %v1043 = vadd.f32 %v907, %v1011
    %v1044 = vadd.f32 %v908, %v1012
    %v1045 = vadd.f32 %v909, %v1013
    %v1046 = vadd.f32 %v910, %v1014
    %v1047 = vmul.f32 %v911, %v228
    %v1048 = vadd.s32 %v913, %v232
    %v1049 = vsub.s32 %v1048, %v93
    %v1050 = vlaneseq
    %v1051 = vshrl.u32 %v1050, 7
    %v1052 = vsub.s32 0, %v1051
    %v1053 = vrot.slane %v1049, %v1052
    %v1054 = vlaneseq
    %v1055 = vshrl.u32 %v1054, 7
    %v1056 = vsub.s32 4, %v1055
    %v1057 = vrot.slane %v1049, %v1056
    %v1058 = vlaneseq
    %v1059 = vshrl.u32 %v1058, 7
    %v1060 = vsub.s32 0, %v1059
    %v1061 = vrot.slane %v1053, %v1060
    %v1062 = vlaneseq
    %v1063 = vshrl.u32 %v1062, 7
    %v1064 = vsub.s32 0, %v1063
    %v1065 = vrot.slane %v1057, %v1064
    %vm1066 = vcmp.eq.s32.totalorder %v1061, %v61
    %vm1067 = vcmp.eq.s32.totalorder %v1065, %v61
    %vm1068 = vcmp.eq.s32.totalorder %v1061, %v62
    %vm1069 = vcmp.eq.s32.totalorder %v1065, %v62
    %vm1070 = vcmp.eq.s32.totalorder %v1061, %v63
    %vm1071 = vcmp.eq.s32.totalorder %v1065, %v63
    %vm1072 = vcmp.eq.s32.totalorder %v1061, %v64
    %vm1073 = vcmp.eq.s32.totalorder %v1065, %v64
    %vm1074 = vcmp.eq.s32.totalorder %v1061, %v65
    %vm1075 = vcmp.eq.s32.totalorder %v1065, %v65
    %vm1076 = vcmp.eq.s32.totalorder %v1061, %v66
    %vm1077 = vcmp.eq.s32.totalorder %v1065, %v66
    %vm1078 = vcmp.eq.s32.totalorder %v1061, %v67
    %vm1079 = vcmp.eq.s32.totalorder %v1065, %v67
    %vm1080 = vcmp.eq.s32.totalorder %v1061, %v68
    %vm1081 = vcmp.eq.s32.totalorder %v1065, %v68
    %vm1082 = vcmp.eq.s32.totalorder %v1061, %v69
    %vm1083 = vcmp.eq.s32.totalorder %v1065, %v69
    %vm1084 = vcmp.eq.s32.totalorder %v1061, %v70
    %vm1085 = vcmp.eq.s32.totalorder %v1065, %v70
    %vm1086 = vcmp.eq.s32.totalorder %v1061, %v71
    %vm1087 = vcmp.eq.s32.totalorder %v1065, %v71
    %vm1088 = vcmp.eq.s32.totalorder %v1061, %v72
    %vm1089 = vcmp.eq.s32.totalorder %v1065, %v72
    %vm1090 = vcmp.eq.s32.totalorder %v1061, %v73
    %vm1091 = vcmp.eq.s32.totalorder %v1065, %v73
    %vm1092 = vcmp.eq.s32.totalorder %v1061, %v74
    %vm1093 = vcmp.eq.s32.totalorder %v1065, %v74
    %vm1094 = vcmp.eq.s32.totalorder %v1061, %v75
    %vm1095 = vcmp.eq.s32.totalorder %v1065, %v75
    %vm1096 = vcmp.eq.s32.totalorder %v1061, %v76
    %vm1097 = vcmp.eq.s32.totalorder %v1065, %v76
    %v1099 = vlaneseq
    %v1100 = vshrl.u32 %v1099, 7
    %v1101 = vsub.s32 0, %v1100
    %v1102 = vrot.slane %v1047, %v1101
    %v1103 = vlaneseq
    %v1104 = vshrl.u32 %v1103, 7
    %v1105 = vsub.s32 4, %v1104
    %v1106 = vrot.slane %v1047, %v1105
    %v1109 = vlaneseq
    %v1110 = vshrl.u32 %v1109, 7
    %v1111 = vsub.s32 0, %v1110
    %v1112 = vrot.slane %v1102, %v1111
    %v1113 = vlaneseq
    %v1114 = vshrl.u32 %v1113, 7
    %v1115 = vsub.s32 0, %v1114
    %v1116 = vrot.slane %v1106, %v1115
    %v1117 = vsel %vm1066, %v1112, 0.0
    %v1118 = vsel %vm1067, %v1116, 0.0
    %v1119 = vsel %vm1068, %v1112, 0.0
    %v1120 = vsel %vm1069, %v1116, 0.0
    %v1121 = vsel %vm1070, %v1112, 0.0
    %v1122 = vsel %vm1071, %v1116, 0.0
    %v1123 = vsel %vm1072, %v1112, 0.0
    %v1124 = vsel %vm1073, %v1116, 0.0
    %v1125 = vsel %vm1074, %v1112, 0.0
    %v1126 = vsel %vm1075, %v1116, 0.0
    %v1127 = vsel %vm1076, %v1112, 0.0
    %v1128 = vsel %vm1077, %v1116, 0.0
    %v1129 = vsel %vm1078, %v1112, 0.0
    %v1130 = vsel %vm1079, %v1116, 0.0
    %v1131 = vsel %vm1080, %v1112, 0.0
    %v1132 = vsel %vm1081, %v1116, 0.0
    %v1133 = vsel %vm1082, %v1112, 0.0
    %v1134 = vsel %vm1083, %v1116, 0.0
    %v1135 = vsel %vm1084, %v1112, 0.0
    %v1136 = vsel %vm1085, %v1116, 0.0
    %v1137 = vsel %vm1086, %v1112, 0.0
    %v1138 = vsel %vm1087, %v1116, 0.0
    %v1139 = vsel %vm1088, %v1112, 0.0
    %v1140 = vsel %vm1089, %v1116, 0.0
    %v1141 = vsel %vm1090, %v1112, 0.0
    %v1142 = vsel %vm1091, %v1116, 0.0
    %v1143 = vsel %vm1092, %v1112, 0.0
    %v1144 = vsel %vm1093, %v1116, 0.0
    %v1145 = vsel %vm1094, %v1112, 0.0
    %v1146 = vsel %vm1095, %v1116, 0.0
    %v1147 = vsel %vm1096, %v1112, 0.0
    %v1148 = vsel %vm1097, %v1116, 0.0
    %v1149 = vadd.f32 %v1015, %v1117
    %v1150 = vadd.f32 %v1016, %v1118
    %v1151 = vadd.f32 %v1017, %v1119
    %v1152 = vadd.f32 %v1018, %v1120
    %v1153 = vadd.f32 %v1019, %v1121
    %v1154 = vadd.f32 %v1020, %v1122
    %v1155 = vadd.f32 %v1021, %v1123
    %v1156 = vadd.f32 %v1022, %v1124
    %v1157 = vadd.f32 %v1023, %v1125
    %v1158 = vadd.f32 %v1024, %v1126
    %v1159 = vadd.f32 %v1025, %v1127
    %v1160 = vadd.f32 %v1026, %v1128
    %v1161 = vadd.f32 %v1027, %v1129
    %v1162 = vadd.f32 %v1028, %v1130
    %v1163 = vadd.f32 %v1029, %v1131
    %v1164 = vadd.f32 %v1030, %v1132
    %v1165 = vadd.f32 %v1031, %v1133
    %v1166 = vadd.f32 %v1032, %v1134
    %v1167 = vadd.f32 %v1033, %v1135
    %v1168 = vadd.f32 %v1034, %v1136
    %v1169 = vadd.f32 %v1035, %v1137
    %v1170 = vadd.f32 %v1036, %v1138
    %v1171 = vadd.f32 %v1037, %v1139
    %v1172 = vadd.f32 %v1038, %v1140
    %v1173 = vadd.f32 %v1039, %v1141
    %v1174 = vadd.f32 %v1040, %v1142
    %v1175 = vadd.f32 %v1041, %v1143
    %v1176 = vadd.f32 %v1042, %v1144
    %v1177 = vadd.f32 %v1043, %v1145
    %v1178 = vadd.f32 %v1044, %v1146
    %v1179 = vadd.f32 %v1045, %v1147
    %v1180 = vadd.f32 %v1046, %v1148
    %v1181 = vld [vmem:[#allocation2] sm:$0xff]
    %v1182 = vld [vmem:[#allocation6] sm:$0xf]
    %vm1183 = vcmask 1022976
    %v1185 = vsel %vm1183, %v1182, 0
    %vm1187 = vcmask 1044480
    %v1189 = vsel %vm1187, %v1179, 0
    %v1192 = vsel %vm1187, %v1180, 0
    %1194 = vmatprep.subr.mxu0 %v1150
    %1195 = vmatpush1.msra.mxu0 %v1149
    %1196 = vmatprep.subr.mxu0 %v1152
    %1197 = vmatpush1.msra.mxu0 %v1151
    %1198 = vmatprep.subr.mxu0 %v1154
    %1199 = vmatpush1.msra.mxu0 %v1153
    %1200 = vmatprep.subr.mxu0 %v1156
    %1201 = vmatpush1.msra.mxu0 %v1155
    %1202 = vmatprep.subr.mxu0 %v1158
    %1203 = vmatpush1.msra.mxu0 %v1157
    %1204 = vmatprep.subr.mxu0 %v1160
    %1205 = vmatpush1.msra.mxu0 %v1159
    %1206 = vmatprep.subr.mxu0 %v1162
    %1207 = vmatpush1.msra.mxu0 %v1161
    %1208 = vmatprep.subr.mxu0 %v1164
    %1209 = vmatpush1.msra.mxu0 %v1163
    %1210 = vmatprep.subr.mxu0 %v1166
    %1211 = vmatpush1.msra.mxu0 %v1165
    %1212 = vmatprep.subr.mxu0 %v1168
    %1213 = vmatpush1.msra.mxu0 %v1167
    %1214 = vmatprep.subr.mxu0 %v1170
    %1215 = vmatpush1.msra.mxu0 %v1169
    %1216 = vmatprep.subr.mxu0 %v1172
    %1217 = vmatpush1.msra.mxu0 %v1171
    %1218 = vmatprep.subr.mxu0 %v1174
    %1219 = vmatpush1.msra.mxu0 %v1173
    %1220 = vmatprep.subr.mxu0 %v1176
    %1221 = vmatpush1.msra.mxu0 %v1175
    %1222 = vmatprep.subr.mxu0 %v1178
    %1223 = vmatpush1.msra.mxu0 %v1177
    %1224 = vmatprep.subr.mxu0 %v1192
    %1225 = vmatpush1.msra.mxu0 %v1189
    %1226 = vmatprep.subr.mxu0 0.0
    %1227 = vmatpush1.msra.mxu0 0.0
    %1228 = vmatprep.subr.mxu0 0.0
    %1229 = vmatpush1.msra.mxu0 0.0
    %1230 = vmatprep.subr.mxu0 0.0
    %1231 = vmatpush1.msra.mxu0 0.0
    %1232 = vmatprep.subr.mxu0 0.0
    %1233 = vmatpush1.msra.mxu0 0.0
    %1234 = vmatprep.subr.mxu0 0.0
    %1235 = vmatpush1.msra.mxu0 0.0
    %1236 = vmatprep.subr.mxu0 0.0
    %1237 = vmatpush1.msra.mxu0 0.0
    %1238 = vmatprep.subr.mxu0 0.0
    %1239 = vmatpush1.msra.mxu0 0.0
    %1240 = vmatprep.subr.mxu0 0.0
    %1241 = vmatpush1.msra.mxu0 0.0
    %1242 = vmatprep.subr.mxu0 0.0
    %1243 = vmatpush1.msra.mxu0 0.0
    %1244 = vmatprep.subr.mxu0 0.0
    %1245 = vmatpush1.msra.mxu0 0.0
    %1246 = vmatprep.subr.mxu0 0.0
    %1247 = vmatpush1.msra.mxu0 0.0
    %1248 = vmatprep.subr.mxu0 0.0
    %1249 = vmatpush1.msra.mxu0 0.0
    %1250 = vmatprep.subr.mxu0 0.0
    %1251 = vmatpush1.msra.mxu0 0.0
    %1252 = vmatprep.subr.mxu0 0.0
    %1253 = vmatpush1.msra.mxu0 0.0
    %1254 = vmatprep.subr.mxu0 0.0
    %1255 = vmatpush1.msra.mxu0 0.0
    %1256 = vmatprep.subr.mxu0 0.0
    %1257 = vmatpush1.msra.mxu0 0.0
    %1258 = vmatprep.mubr.f32.mxu0 0.0
    %1259 = vmatmul.mubr.f32.gmra.mrb[0].mxu0 %v1185
    %v1260 = vpop.f32.mrb[0].mxu0
    %v1261 = vadd.f32 0.0, %v1260
    %v1262 = vpop.f32.mrb[0].mxu0
    %v1263 = vadd.f32 0.0, %v1262
    %1264 = vdwg.mxu0
    %v1267 = vcombine.low %v1261, %v1263
    %v1269 = vadd.f32 %v1181, %v1267
    %1270 = vst [vmem:[#allocation2] sm:$0xff] %v1269
    // Predicated region
    $region22: #{tpu_custom_call.1} parent=1 // pred_check
      %p1271 = pneg %p36
    $region23: #{tpu_custom_call.1} parent=1 // pred_check_branch
      %1273 = sbr.rel (%p1271) target = $region25
    $region24: #{tpu_custom_call.1} parent=1 // pred_region
      %v1274 = vld [vmem:[#allocation2] sm:$0xff]
      %1275 = vst [vmem:[#allocation8] sm:$0xff] %v1274
    $region25: #{tpu_custom_call.1} parent=1 // pred_fallthru
      _
    // Predicated region
    $region26: #{tpu_custom_call.1} parent=1 // pred_check
      _
    $region27: #{tpu_custom_call.1} parent=1 // pred_check_branch
      %1277 = sbr.rel (0) target = $region29
    $region28: #{tpu_custom_call.1} parent=1 // pred_region
      %s1279 = ssub.s32 128, 128
      %1280 = vsyncadd [#allocation5], %s1279
      %s1282 = sshll.u32 [#allocation8], 4
      %s1283 = int_to_ptr.vmem [resolvable:$true] %s1282
      %1285 = dma.vmem_to_hbm [thread:$0]  %s1283, 128, %s2, [#allocation5]
    $region29: #{tpu_custom_call.1} parent=1 // pred_fallthru
      _
    // Predicated region
    $region30: #{tpu_custom_call.1} parent=1 // pred_check
      _
    $region31: #{tpu_custom_call.1} parent=1 // pred_check_branch
      %1287 = sbr.rel (0) target = $region33
    $region32: #{tpu_custom_call.1} parent=1 // pred_region
      %1288 = dma.done [#allocation5], 128
    $region33: #{tpu_custom_call.1} parent=1 // pred_fallthru
      _
    %1289 = vsyncpa [#allocation4], 1
    %1290 = vsyncpa [#allocation7], 1
    %1291 = vsyncpa [#allocation5], 1

</llo_original>
